<compile_context>
chip_gen: v5e
topology: v5e:2x2
jax: 0.10.0
libtpu: 0.0.40
codegen_flags: <defaults>
</compile_context>

<pallas_src>
import jax
import jax.numpy as jnp
from jax.experimental import pallas as pl
from jax.experimental.pallas import tpu as pltpu


TJ_SLAB = 128          # lane-width slab for the score / online-softmax inner loop
NEG_INF = -1e30        # finite mask sentinel (keeps exp() NaN-free)


# ----------------------------------------------------------------------------
# Stage 1: GATv2 input projections (blocked over rows, hoisted out of the
#          O(N^2) attention loop).  f_in is tiny (float_feat_dim + 1), so the
#          matmul is done as an unrolled outer-product accumulation on the VPU.
# ----------------------------------------------------------------------------
def _gat_project_kernel(x_ref, wl_ref, bl_ref, wr_ref, br_ref, att_ref,
                        xlf_ref, xlb_ref, xr_ref, sl_ref, sr_ref):
    """xl = x@Wl+bl, xr = x@Wr+br, sl = 0.6*att.xl, sr = 0.6*att.xr (per node)."""
    x = x_ref[...]                                        # [T, f_in]
    wl = wl_ref[...]                                      # [f_in, C]
    wr = wr_ref[...]
    att = att_ref[...]                                    # [1, C]
    f_in = x.shape[1]

    xl = bl_ref[...] + x[:, 0:1] * wl[0:1, :]             # [T, C]
    xr = br_ref[...] + x[:, 0:1] * wr[0:1, :]
    for k in range(1, f_in):                              # f_in is tiny (static)
        xk = x[:, k:k + 1]
        xl = xl + xk * wl[k:k + 1, :]
        xr = xr + xk * wr[k:k + 1, :]

    xlf_ref[...] = xl
    xlb_ref[...] = xl.astype(jnp.bfloat16)                # bf16 MXU operand
    xr_ref[...] = xr
    # Hoisted linear part of leaky_relu(z,0.2) = 0.6*z + 0.4*|z|.
    sl_ref[...] = 0.6 * jnp.sum(xl * att, axis=1, keepdims=True)
    sr_ref[...] = 0.6 * jnp.sum(xr * att, axis=1, keepdims=True)


# ----------------------------------------------------------------------------
# Stage 2: tiled dense GATv2 attention + ELU + logit head (flash-style, with
#          128-lane slab chunking and per-tile sparsity skipping).
# ----------------------------------------------------------------------------
def _gat_attention_kernel(counts_ref,                         # SMEM, scalar prefetch
                          xr_ref, sr_ref, xlt_ref, sl_ref, xlb_ref, adj_ref,
                          att04_ref, gbias_ref, wlog_ref, blog_ref,
                          out_ref,
                          m_sc, l_sc, acc_sc):
    """One (i, j) tile of the attention, online softmax over j (slab-chunked).

    Per grid step:
      xr_ref:    [TI, C]   f32 target-side projection block (resident over slabs)
      sr_ref:    [TI, 1]   0.6 * att . xr[i]
      xlt_ref:   [C, TJ]   f32 source-side projection block, transposed
      sl_ref:    [1, TJ]   0.6 * att . xl[j]
      xlb_ref:   [TJ, C]   bf16 source projections (MXU aggregation operand)
      adj_ref:   [TI, TJ]  int8 0/1 adjacency (+ self loops)
      att04_ref: (C,)      0.4 * att, SMEM scalars
      out_ref:   [TI, F_pad]  lane-dense padded logits (written at last j only)
      scratch:   m_sc/l_sc [TI,1], acc_sc [TI,C]  online-softmax state
    """
    i = pl.program_id(0)
    j = pl.program_id(1)
    n_j = pl.num_programs(1)

    @pl.when(j == 0)
    def _init():
        m_sc[...] = jnp.full(m_sc.shape, NEG_INF, jnp.float32)
        l_sc[...] = jnp.zeros(l_sc.shape, jnp.float32)
        acc_sc[...] = jnp.zeros(acc_sc.shape, jnp.float32)

    # Skip all score/softmax work for tiles with no edges (self loops included).
    @pl.when(counts_ref[i * n_j + j] > 0)
    def _compute():
        xr_i = xr_ref[...]                    # [TI, C] resident across slabs
        sr06 = sr_ref[...]                    # [TI, 1]
        cdim = xr_i.shape[1]
        tj = adj_ref.shape[1]

        for s in range(tj // TJ_SLAB):        # static 128-lane slab chunking
            lo = s * TJ_SLAB
            hi = lo + TJ_SLAB
            xlt_s = xlt_ref[:, lo:hi]         # [C, 128]

            # e = 0.6*(att.xl[j] + att.xr[i]) + sum_c 0.4*att_c * |xl[j,c]+xr[i,c]|
            e = sr06 + sl_ref[:, lo:hi]                       # [TI, 128]
            for ch in range(cdim):            # cdim small (hidden_dim), unrolled
                zc = xr_i[:, ch:ch + 1] + xlt_s[ch:ch + 1, :] # [TI, 128]
                e = e + jnp.abs(zc) * att04_ref[ch]           # SMEM scalar bcast

            # Mask after the channel loop (keeps the vreg peak low).
            valid = adj_ref[:, lo:hi] != 0
            e = jnp.where(valid, e, NEG_INF)

            # Online softmax update (f32 statistics).
            m_prev = m_sc[...]
            m_new = jnp.maximum(m_prev, jnp.max(e, axis=-1, keepdims=True))
            corr = jnp.exp(m_prev - m_new)
            # Re-mask after exp: a slab may have no valid neighbor for a row.
            p = jnp.where(valid, jnp.exp(e - m_new), 0.0)
            l_sc[...] = corr * l_sc[...] + jnp.sum(p, axis=-1, keepdims=True)
            acc_sc[...] = corr * acc_sc[...] + jnp.dot(
                p.astype(jnp.bfloat16), xlb_ref[lo:hi, :],
                preferred_element_type=jnp.float32)
            m_sc[...] = m_new

    @pl.when(j == n_j - 1)
    def _finalize():
        inv_l = pl.reciprocal(l_sc[...], approx=True)         # EUP, ~free
        h = acc_sc[...] * inv_l + gbias_ref[...]              # [TI, C]
        h = jnp.where(h > 0, h, jnp.exp(jnp.minimum(h, 0.0)) - 1.0)   # ELU
        logits = jnp.dot(h, wlog_ref[...],
                         preferred_element_type=jnp.float32) + blog_ref[...]
        out_ref[...] = logits.astype(out_ref.dtype)           # lane-dense store


# ----------------------------------------------------------------------------
# Wrapper reproducing GATv2NBNet.forward semantics.
# ----------------------------------------------------------------------------
def _round_up(a, b):
    return (a + b - 1) // b * b


def gatv2_nb_forward(x_float, x_binary, edge_index, params,
                     *, tile_i=128, tile_j=512):
    assert tile_i % 8 == 0 and tile_j % TJ_SLAB == 0 and tile_j % tile_i == 0

    if x_binary.ndim == 1:
        x_binary = x_binary[:, None]
    x = jnp.concatenate([x_float.astype(jnp.float32),
                         x_binary.astype(jnp.float32)], axis=1)
    n = x.shape[0]
    f_in = x.shape[1]
    c = params["w_l"].shape[1]                 # hidden_dim
    f_out = params["w_logit"].shape[1]         # float_feat_dim

    n_pad = _round_up(max(n, 1), tile_j)       # tile_i | tile_j so both divide
    f_pad = _round_up(max(f_out, 1), 128)
    n_i = n_pad // tile_i
    n_j = n_pad // tile_j

    # Padded nodes have zero features and a self loop only; rows sliced away.
    x_pad = jnp.zeros((n_pad, f_in), jnp.float32).at[:n].set(x)

    src = edge_index[0].astype(jnp.int32)
    dst = edge_index[1].astype(jnp.int32)
    diag = jnp.arange(n_pad, dtype=jnp.int32)

    # Dense int8 adjacency with self loops: adj[i, j] = 1 iff edge j->i or i==j.
    adj = jnp.zeros((n_pad, n_pad), jnp.int8)
    adj = adj.at[dst, src].set(1)
    adj = adj.at[diag, diag].set(1)

    # Per-(i-block, j-block) edge counts for tile skipping (flat 1-D for SMEM).
    counts = jnp.zeros((n_i * n_j,), jnp.int32)
    counts = counts.at[(dst // tile_i) * n_j + (src // tile_j)].add(1)
    counts = counts.at[(diag // tile_i) * n_j + (diag // tile_j)].add(1)

    # ---- Stage 1: projections, blocked over rows. ----
    xl_f32, xl_bf16, xr, sl06, sr06 = pl.pallas_call(
        _gat_project_kernel,
        out_shape=(
            jax.ShapeDtypeStruct((n_pad, c), jnp.float32),
            jax.ShapeDtypeStruct((n_pad, c), jnp.bfloat16),
            jax.ShapeDtypeStruct((n_pad, c), jnp.float32),
            jax.ShapeDtypeStruct((n_pad, 1), jnp.float32),
            jax.ShapeDtypeStruct((n_pad, 1), jnp.float32),
        ),
        grid_spec=pltpu.PrefetchScalarGridSpec(
            num_scalar_prefetch=0,
            grid=(n_pad // tile_i,),
            in_specs=[
                pl.BlockSpec((tile_i, f_in), lambda i: (i, 0)),
                pl.BlockSpec((f_in, c), lambda i: (0, 0)),
                pl.BlockSpec((1, c), lambda i: (0, 0)),
                pl.BlockSpec((f_in, c), lambda i: (0, 0)),
                pl.BlockSpec((1, c), lambda i: (0, 0)),
                pl.BlockSpec((1, c), lambda i: (0, 0)),
            ],
            out_specs=(
                pl.BlockSpec((tile_i, c), lambda i: (i, 0)),
                pl.BlockSpec((tile_i, c), lambda i: (i, 0)),
                pl.BlockSpec((tile_i, c), lambda i: (i, 0)),
                pl.BlockSpec((tile_i, 1), lambda i: (i, 0)),
                pl.BlockSpec((tile_i, 1), lambda i: (i, 0)),
            ),
        ),
        compiler_params=pltpu.CompilerParams(dimension_semantics=("parallel",)),
    )(x_pad, params["w_l"], params["b_l"], params["w_r"], params["b_r"],
      params["att"])

    # Layout plumbing (tiny, plain JAX).
    xlt = xl_f32.T                                  # [C, Np]  (j on the lane axis)
    sl06_row = sl06.T                               # [1, Np]
    att04 = (0.4 * params["att"]).reshape(-1)       # (C,) SMEM scalars
    w_logit_pad = jnp.zeros((c, f_pad), jnp.float32).at[:, :f_out].set(params["w_logit"])
    b_logit_pad = jnp.zeros((1, f_pad), jnp.float32).at[:, :f_out].set(params["b_logit"])

    # ---- Stage 2: tiled attention + head. ----
    grid = (n_i, n_j)
    logits_pad = pl.pallas_call(
        _gat_attention_kernel,
        out_shape=jax.ShapeDtypeStruct((n_pad, f_pad), jnp.float32),
        grid_spec=pltpu.PrefetchScalarGridSpec(
            num_scalar_prefetch=1,                                  # counts -> SMEM
            grid=grid,
            in_specs=[
                pl.BlockSpec((tile_i, c), lambda i, j, cnt: (i, 0)),        # xr
                pl.BlockSpec((tile_i, 1), lambda i, j, cnt: (i, 0)),        # sr06
                pl.BlockSpec((c, tile_j), lambda i, j, cnt: (0, j)),        # xl^T f32
                pl.BlockSpec((1, tile_j), lambda i, j, cnt: (0, j)),        # sl06
                pl.BlockSpec((tile_j, c), lambda i, j, cnt: (j, 0)),        # xl bf16
                pl.BlockSpec((tile_i, tile_j), lambda i, j, cnt: (i, j)),   # adj int8
                pl.BlockSpec(memory_space=pltpu.MemorySpace.SMEM),          # 0.4*att
                pl.BlockSpec((1, c), lambda i, j, cnt: (0, 0)),             # gat bias
                pl.BlockSpec((c, f_pad), lambda i, j, cnt: (0, 0)),         # w_logit
                pl.BlockSpec((1, f_pad), lambda i, j, cnt: (0, 0)),         # b_logit
            ],
            out_specs=pl.BlockSpec((tile_i, f_pad), lambda i, j, cnt: (i, 0)),
            scratch_shapes=[
                pltpu.VMEM((tile_i, 1), jnp.float32),   # running max
                pltpu.VMEM((tile_i, 1), jnp.float32),   # running sum
                pltpu.VMEM((tile_i, c), jnp.float32),   # running weighted message
            ],
        ),
        compiler_params=pltpu.CompilerParams(
            dimension_semantics=("parallel", "arbitrary")),
    )(counts, xr, sr06, xlt, sl06_row, xl_bf16, adj, att04,
      params["gat_bias"], w_logit_pad, b_logit_pad)

    logits = logits_pad[:n, :f_out]

    # Input-independent parameter transform; plain JAX glue.
    dispersion = jax.nn.softplus(params["dispersion"])
    return logits, dispersion


# ----------------------------------------------------------------------------
# Parameters (synthetic, matching GATv2NBNet.__init__ shapes).
# ----------------------------------------------------------------------------
def init_params(key, float_feat_dim, hidden_dim):
    f_in = float_feat_dim + 1
    ks = jax.random.split(key, 6)

    def glorot(k, shape):
        fan_in, fan_out = shape[0], shape[1]
        scale = jnp.sqrt(6.0 / (fan_in + fan_out))
        return jax.random.uniform(k, shape, jnp.float32, -scale, scale)

    return {
        # GATv2Conv (heads=1): lin_l, lin_r, att, output bias.
        "w_l": glorot(ks[0], (f_in, hidden_dim)),
        "b_l": jnp.zeros((1, hidden_dim), jnp.float32),
        "w_r": glorot(ks[1], (f_in, hidden_dim)),
        "b_r": jnp.zeros((1, hidden_dim), jnp.float32),
        "att": glorot(ks[2], (1, hidden_dim)),
        "gat_bias": jnp.zeros((1, hidden_dim), jnp.float32),
        # to_logit: Linear(hidden_dim, float_feat_dim), stored as [C, F].
        "w_logit": glorot(ks[3], (hidden_dim, float_feat_dim)),
        "b_logit": jnp.zeros((1, float_feat_dim), jnp.float32),
        # dispersion parameter (initialized to zeros in the module).
        "dispersion": jnp.zeros((float_feat_dim,), jnp.float32),
    }


if __name__ == "__main__":
    FLOAT_FEAT_DIM = 4
    HIDDEN_DIM = 32
    N_NODES = 8
    N_EDGES = 16

    key = jax.random.PRNGKey(0)
    k_params, k_xf, k_xb, k_src, k_dst = jax.random.split(key, 5)

    params = init_params(k_params, FLOAT_FEAT_DIM, HIDDEN_DIM)

    x_float = jax.random.normal(k_xf, (N_NODES, FLOAT_FEAT_DIM), jnp.float32)
    x_binary = (jax.random.uniform(k_xb, (N_NODES,)) > 0.5).astype(jnp.float32)
    edge_index = jnp.stack([
        jax.random.randint(k_src, (N_EDGES,), 0, N_NODES),
        jax.random.randint(k_dst, (N_EDGES,), 0, N_NODES),
    ], axis=0)

    logits, dispersion = gatv2_nb_forward(x_float, x_binary, edge_index, params)
    jax.block_until_ready((logits, dispersion))

    assert logits.shape == (N_NODES, FLOAT_FEAT_DIM)
    assert dispersion.shape == (FLOAT_FEAT_DIM,)
    assert bool(jnp.all(jnp.isfinite(logits)))
    print("KERNEL_OK")
</pallas_src>

<mosaic_0001>
module attributes {stable_mosaic.version = 11 : i64} {
  func.func @_gat_project_kernel(%arg0: i32, %arg1: memref<128x5xf32, #tpu.memory_space<vmem>>, %arg2: memref<5x32xf32, #tpu.memory_space<vmem>>, %arg3: memref<1x32xf32, #tpu.memory_space<vmem>>, %arg4: memref<5x32xf32, #tpu.memory_space<vmem>>, %arg5: memref<1x32xf32, #tpu.memory_space<vmem>>, %arg6: memref<1x32xf32, #tpu.memory_space<vmem>>, %arg7: memref<128x32xf32, #tpu.memory_space<vmem>>, %arg8: memref<128x32xbf16, #tpu.memory_space<vmem>>, %arg9: memref<128x32xf32, #tpu.memory_space<vmem>>, %arg10: memref<128x1xf32, #tpu.memory_space<vmem>>, %arg11: memref<128x1xf32, #tpu.memory_space<vmem>>) attributes {dimension_semantics = [#tpu.dimension_semantics<parallel>], iteration_bounds = array<i64: 4>, scalar_prefetch = 0 : i64, scratch_operands = 0 : i64, tpu.core_type = #tpu.core_type<tc>, window_params = [{transform_indices = @transform_0, window_bounds = array<i64: 128, 5>}, {pipeline_mode = #tpu.pipeline_mode<synchronous>, transform_indices = @transform_1, window_bounds = array<i64: 5, 32>}, {pipeline_mode = #tpu.pipeline_mode<synchronous>, transform_indices = @transform_2, window_bounds = array<i64: 1, 32>}, {pipeline_mode = #tpu.pipeline_mode<synchronous>, transform_indices = @transform_3, window_bounds = array<i64: 5, 32>}, {pipeline_mode = #tpu.pipeline_mode<synchronous>, transform_indices = @transform_4, window_bounds = array<i64: 1, 32>}, {pipeline_mode = #tpu.pipeline_mode<synchronous>, transform_indices = @transform_5, window_bounds = array<i64: 1, 32>}, {transform_indices = @transform_6, window_bounds = array<i64: 128, 32>}, {transform_indices = @transform_7, window_bounds = array<i64: 128, 32>}, {transform_indices = @transform_8, window_bounds = array<i64: 128, 32>}, {transform_indices = @transform_9, window_bounds = array<i64: 128, 1>}, {transform_indices = @transform_10, window_bounds = array<i64: 128, 1>}]} {
    %c0 = arith.constant 0 : index
    %c0_0 = arith.constant 0 : index
    %0 = vector.load %arg1[%c0, %c0_0] : memref<128x5xf32, #tpu.memory_space<vmem>>, vector<128x5xf32>
    %c0_1 = arith.constant 0 : index
    %c0_2 = arith.constant 0 : index
    %1 = vector.load %arg2[%c0_1, %c0_2] : memref<5x32xf32, #tpu.memory_space<vmem>>, vector<5x32xf32>
    %c0_3 = arith.constant 0 : index
    %c0_4 = arith.constant 0 : index
    %2 = vector.load %arg4[%c0_3, %c0_4] : memref<5x32xf32, #tpu.memory_space<vmem>>, vector<5x32xf32>
    %c0_5 = arith.constant 0 : index
    %c0_6 = arith.constant 0 : index
    %3 = vector.load %arg6[%c0_5, %c0_6] : memref<1x32xf32, #tpu.memory_space<vmem>>, vector<1x32xf32>
    %c0_7 = arith.constant 0 : index
    %c0_8 = arith.constant 0 : index
    %4 = vector.load %arg3[%c0_7, %c0_8] : memref<1x32xf32, #tpu.memory_space<vmem>>, vector<1x32xf32>
    %5 = vector.extract_strided_slice %0 {offsets = [0, 0], sizes = [128, 1], strides = [1, 1]} : vector<128x5xf32> to vector<128x1xf32>
    %6 = vector.extract_strided_slice %1 {offsets = [0, 0], sizes = [1, 32], strides = [1, 1]} : vector<5x32xf32> to vector<1x32xf32>
    %7 = vector.broadcast %5 : vector<128x1xf32> to vector<128x32xf32>
    %8 = vector.broadcast %6 : vector<1x32xf32> to vector<128x32xf32>
    %9 = arith.mulf %7, %8 : vector<128x32xf32>
    %10 = vector.broadcast %4 : vector<1x32xf32> to vector<128x32xf32>
    %11 = arith.addf %10, %9 : vector<128x32xf32>
    %c0_9 = arith.constant 0 : index
    %c0_10 = arith.constant 0 : index
    %12 = vector.load %arg5[%c0_9, %c0_10] : memref<1x32xf32, #tpu.memory_space<vmem>>, vector<1x32xf32>
    %13 = vector.extract_strided_slice %0 {offsets = [0, 0], sizes = [128, 1], strides = [1, 1]} : vector<128x5xf32> to vector<128x1xf32>
    %14 = vector.extract_strided_slice %2 {offsets = [0, 0], sizes = [1, 32], strides = [1, 1]} : vector<5x32xf32> to vector<1x32xf32>
    %15 = vector.broadcast %13 : vector<128x1xf32> to vector<128x32xf32>
    %16 = vector.broadcast %14 : vector<1x32xf32> to vector<128x32xf32>
    %17 = arith.mulf %15, %16 : vector<128x32xf32>
    %18 = vector.broadcast %12 : vector<1x32xf32> to vector<128x32xf32>
    %19 = arith.addf %18, %17 : vector<128x32xf32>
    %20 = vector.extract_strided_slice %0 {offsets = [0, 1], sizes = [128, 1], strides = [1, 1]} : vector<128x5xf32> to vector<128x1xf32>
    %21 = vector.extract_strided_slice %1 {offsets = [1, 0], sizes = [1, 32], strides = [1, 1]} : vector<5x32xf32> to vector<1x32xf32>
    %22 = vector.broadcast %20 : vector<128x1xf32> to vector<128x32xf32>
    %23 = vector.broadcast %21 : vector<1x32xf32> to vector<128x32xf32>
    %24 = arith.mulf %22, %23 : vector<128x32xf32>
    %25 = arith.addf %11, %24 : vector<128x32xf32>
    %26 = vector.extract_strided_slice %2 {offsets = [1, 0], sizes = [1, 32], strides = [1, 1]} : vector<5x32xf32> to vector<1x32xf32>
    %27 = vector.broadcast %20 : vector<128x1xf32> to vector<128x32xf32>
    %28 = vector.broadcast %26 : vector<1x32xf32> to vector<128x32xf32>
    %29 = arith.mulf %27, %28 : vector<128x32xf32>
    %30 = arith.addf %19, %29 : vector<128x32xf32>
    %31 = vector.extract_strided_slice %0 {offsets = [0, 2], sizes = [128, 1], strides = [1, 1]} : vector<128x5xf32> to vector<128x1xf32>
    %32 = vector.extract_strided_slice %1 {offsets = [2, 0], sizes = [1, 32], strides = [1, 1]} : vector<5x32xf32> to vector<1x32xf32>
    %33 = vector.broadcast %31 : vector<128x1xf32> to vector<128x32xf32>
    %34 = vector.broadcast %32 : vector<1x32xf32> to vector<128x32xf32>
    %35 = arith.mulf %33, %34 : vector<128x32xf32>
    %36 = arith.addf %25, %35 : vector<128x32xf32>
    %37 = vector.extract_strided_slice %2 {offsets = [2, 0], sizes = [1, 32], strides = [1, 1]} : vector<5x32xf32> to vector<1x32xf32>
    %38 = vector.broadcast %31 : vector<128x1xf32> to vector<128x32xf32>
    %39 = vector.broadcast %37 : vector<1x32xf32> to vector<128x32xf32>
    %40 = arith.mulf %38, %39 : vector<128x32xf32>
    %41 = arith.addf %30, %40 : vector<128x32xf32>
    %42 = vector.extract_strided_slice %0 {offsets = [0, 3], sizes = [128, 1], strides = [1, 1]} : vector<128x5xf32> to vector<128x1xf32>
    %43 = vector.extract_strided_slice %1 {offsets = [3, 0], sizes = [1, 32], strides = [1, 1]} : vector<5x32xf32> to vector<1x32xf32>
    %44 = vector.broadcast %42 : vector<128x1xf32> to vector<128x32xf32>
    %45 = vector.broadcast %43 : vector<1x32xf32> to vector<128x32xf32>
    %46 = arith.mulf %44, %45 : vector<128x32xf32>
    %47 = arith.addf %36, %46 : vector<128x32xf32>
    %48 = vector.extract_strided_slice %2 {offsets = [3, 0], sizes = [1, 32], strides = [1, 1]} : vector<5x32xf32> to vector<1x32xf32>
    %49 = vector.broadcast %42 : vector<128x1xf32> to vector<128x32xf32>
    %50 = vector.broadcast %48 : vector<1x32xf32> to vector<128x32xf32>
    %51 = arith.mulf %49, %50 : vector<128x32xf32>
    %52 = arith.addf %41, %51 : vector<128x32xf32>
    %53 = vector.extract_strided_slice %0 {offsets = [0, 4], sizes = [128, 1], strides = [1, 1]} : vector<128x5xf32> to vector<128x1xf32>
    %54 = vector.extract_strided_slice %1 {offsets = [4, 0], sizes = [1, 32], strides = [1, 1]} : vector<5x32xf32> to vector<1x32xf32>
    %55 = vector.broadcast %53 : vector<128x1xf32> to vector<128x32xf32>
    %56 = vector.broadcast %54 : vector<1x32xf32> to vector<128x32xf32>
    %57 = arith.mulf %55, %56 : vector<128x32xf32>
    %58 = arith.addf %47, %57 : vector<128x32xf32>
    %59 = vector.extract_strided_slice %2 {offsets = [4, 0], sizes = [1, 32], strides = [1, 1]} : vector<5x32xf32> to vector<1x32xf32>
    %60 = vector.broadcast %53 : vector<128x1xf32> to vector<128x32xf32>
    %61 = vector.broadcast %59 : vector<1x32xf32> to vector<128x32xf32>
    %62 = arith.mulf %60, %61 : vector<128x32xf32>
    %63 = arith.addf %52, %62 : vector<128x32xf32>
    %c0_11 = arith.constant 0 : index
    %c0_12 = arith.constant 0 : index
    %64 = vector.load %arg7[%c0_11, %c0_12] : memref<128x32xf32, #tpu.memory_space<vmem>>, vector<128x32xf32>
    tpu.vector_store %arg7[%c0_11, %c0_12], %58 {strides = array<i32>} : memref<128x32xf32, #tpu.memory_space<vmem>>, vector<128x32xf32>,
    %65 = arith.truncf %58 : vector<128x32xf32> to vector<128x32xbf16>
    %c0_13 = arith.constant 0 : index
    %c0_14 = arith.constant 0 : index
    %66 = vector.load %arg8[%c0_13, %c0_14] : memref<128x32xbf16, #tpu.memory_space<vmem>>, vector<128x32xbf16>
    tpu.vector_store %arg8[%c0_13, %c0_14], %65 {strides = array<i32>} : memref<128x32xbf16, #tpu.memory_space<vmem>>, vector<128x32xbf16>,
    %c0_15 = arith.constant 0 : index
    %c0_16 = arith.constant 0 : index
    %67 = vector.load %arg9[%c0_15, %c0_16] : memref<128x32xf32, #tpu.memory_space<vmem>>, vector<128x32xf32>
    tpu.vector_store %arg9[%c0_15, %c0_16], %63 {strides = array<i32>} : memref<128x32xf32, #tpu.memory_space<vmem>>, vector<128x32xf32>,
    %68 = vector.broadcast %3 : vector<1x32xf32> to vector<128x32xf32>
    %69 = arith.mulf %58, %68 : vector<128x32xf32>
    %cst = arith.constant dense<0.000000e+00> : vector<128xf32>
    %70 = vector.multi_reduction <add>, %69, %cst [1] : vector<128x32xf32> to vector<128xf32>
    %71 = vector.shape_cast %70 : vector<128xf32> to vector<128x1xf32>
    %cst_17 = arith.constant 6.000000e-01 : f32
    %72 = vector.broadcast %cst_17 : f32 to vector<128x1xf32>
    %73 = arith.mulf %72, %71 : vector<128x1xf32>
    %c0_18 = arith.constant 0 : index
    %c0_19 = arith.constant 0 : index
    %74 = vector.load %arg10[%c0_18, %c0_19] : memref<128x1xf32, #tpu.memory_space<vmem>>, vector<128x1xf32>
    tpu.vector_store %arg10[%c0_18, %c0_19], %73 {strides = array<i32>} : memref<128x1xf32, #tpu.memory_space<vmem>>, vector<128x1xf32>,
    %75 = vector.broadcast %3 : vector<1x32xf32> to vector<128x32xf32>
    %76 = arith.mulf %63, %75 : vector<128x32xf32>
    %cst_20 = arith.constant dense<0.000000e+00> : vector<128xf32>
    %77 = vector.multi_reduction <add>, %76, %cst_20 [1] : vector<128x32xf32> to vector<128xf32>
    %78 = vector.shape_cast %77 : vector<128xf32> to vector<128x1xf32>
    %cst_21 = arith.constant 6.000000e-01 : f32
    %79 = vector.broadcast %cst_21 : f32 to vector<128x1xf32>
    %80 = arith.mulf %79, %78 : vector<128x1xf32>
    %c0_22 = arith.constant 0 : index
    %c0_23 = arith.constant 0 : index
    %81 = vector.load %arg11[%c0_22, %c0_23] : memref<128x1xf32, #tpu.memory_space<vmem>>, vector<128x1xf32>
    tpu.vector_store %arg11[%c0_22, %c0_23], %80 {strides = array<i32>} : memref<128x1xf32, #tpu.memory_space<vmem>>, vector<128x1xf32>,
    return
  }
  func.func @transform_0(%arg0: i32) -> (i32, i32) {
    %c0_i32 = arith.constant 0 : i32
    %c0_i32_0 = arith.constant 0 : i32
    return %arg0, %c0_i32 : i32, i32
  }
  func.func @transform_1(%arg0: i32) -> (i32, i32) {
    %c0_i32 = arith.constant 0 : i32
    %c0_i32_0 = arith.constant 0 : i32
    %c0_i32_1 = arith.constant 0 : i32
    return %c0_i32, %c0_i32_0 : i32, i32
  }
  func.func @transform_2(%arg0: i32) -> (i32, i32) {
    %c0_i32 = arith.constant 0 : i32
    %c0_i32_0 = arith.constant 0 : i32
    %c0_i32_1 = arith.constant 0 : i32
    return %c0_i32, %c0_i32_0 : i32, i32
  }
  func.func @transform_3(%arg0: i32) -> (i32, i32) {
    %c0_i32 = arith.constant 0 : i32
    %c0_i32_0 = arith.constant 0 : i32
    %c0_i32_1 = arith.constant 0 : i32
    return %c0_i32, %c0_i32_0 : i32, i32
  }
  func.func @transform_4(%arg0: i32) -> (i32, i32) {
    %c0_i32 = arith.constant 0 : i32
    %c0_i32_0 = arith.constant 0 : i32
    %c0_i32_1 = arith.constant 0 : i32
    return %c0_i32, %c0_i32_0 : i32, i32
  }
  func.func @transform_5(%arg0: i32) -> (i32, i32) {
    %c0_i32 = arith.constant 0 : i32
    %c0_i32_0 = arith.constant 0 : i32
    %c0_i32_1 = arith.constant 0 : i32
    return %c0_i32, %c0_i32_0 : i32, i32
  }
  func.func @transform_6(%arg0: i32) -> (i32, i32) {
    %c0_i32 = arith.constant 0 : i32
    %c0_i32_0 = arith.constant 0 : i32
    return %arg0, %c0_i32 : i32, i32
  }
  func.func @transform_7(%arg0: i32) -> (i32, i32) {
    %c0_i32 = arith.constant 0 : i32
    %c0_i32_0 = arith.constant 0 : i32
    return %arg0, %c0_i32 : i32, i32
  }
  func.func @transform_8(%arg0: i32) -> (i32, i32) {
    %c0_i32 = arith.constant 0 : i32
    %c0_i32_0 = arith.constant 0 : i32
    return %arg0, %c0_i32 : i32, i32
  }
  func.func @transform_9(%arg0: i32) -> (i32, i32) {
    %c0_i32 = arith.constant 0 : i32
    %c0_i32_0 = arith.constant 0 : i32
    return %arg0, %c0_i32 : i32, i32
  }
  func.func @transform_10(%arg0: i32) -> (i32, i32) {
    %c0_i32 = arith.constant 0 : i32
    %c0_i32_0 = arith.constant 0 : i32
    return %arg0, %c0_i32 : i32, i32
  }
}

</mosaic_0001>

<llo_original>
// kernel: tpu_custom_call.1
$region0: #{tpu_custom_call.1}
  #allocation0 [shape = 'u32[]', space=smem, size = 0x4, offset = 0x4, fixed_abs, tag = 'smem constant byte address 0x4 - core index']
  #allocation1 [shape = 'u32[72,128]{1,0:T(1,128)}', space=vmem, size = 0x9000, scoped, tag = 'internal scratch']
  %s0 = inlined_call_operand.vmem [shape: f32[512,5], index: 0, kind: input, shape index: {}]
  %s1 = inlined_call_operand.vmem [shape: f32[5,32], index: 1, kind: input, shape index: {}]
  %s2 = inlined_call_operand.vmem [shape: f32[1,32], index: 2, kind: input, shape index: {}]
  %s3 = inlined_call_operand.vmem [shape: f32[5,32], index: 3, kind: input, shape index: {}]
  %s4 = inlined_call_operand.vmem [shape: f32[1,32], index: 4, kind: input, shape index: {}]
  %s5 = inlined_call_operand.vmem [shape: f32[1,32], index: 5, kind: input, shape index: {}]
  %s6 = inlined_call_operand.vmem [shape: f32[512,32], index: 6, kind: output, shape index: {0}]
  %s7 = inlined_call_operand.vmem [shape: bf16[512,32], index: 7, kind: output, shape index: {1}]
  %s8 = inlined_call_operand.vmem [shape: f32[512,32], index: 8, kind: output, shape index: {2}]
  %s9 = inlined_call_operand.vmem [shape: f32[512,1], index: 9, kind: output, shape index: {3}]
  %s10 = inlined_call_operand.vmem [shape: f32[512,1], index: 10, kind: output, shape index: {4}]
  %11 = xla_tuple %s6, %s7, %s8, %s9, %s10
  %s12 = sld [smem:[#allocation0]]
  $region89: #{tpu_custom_call.1} parent=0
    _
  %s14 = ssub.s32 1, %s12
  %s15 = scalar_select 0, %s14, %s12
  loop: start=0, step=1, limit=6
  $region2: #{tpu_custom_call.1} parent=0 // loop_pre_header
    _
  $region3: #{tpu_custom_call.1} parent=0 // loop_header
    %s17 = sphi 0, %s21
    %p18 = scmp.ge.s32.totalorder %s17, 6
    %s27 = sphi 0, %s29
    %s30 = sphi 0, %s27
    %s31 = sphi 0, %s30
    %s47 = sphi 0, %s31
    %s51 = sphi 0, %s51
    %s53 = sphi 0, %s51
    %s54 = sphi 0, %s53
    %s68 = sphi 0, %s54
    %s72 = sphi 0, %s72
    %s74 = sphi 0, %s72
    %s75 = sphi 0, %s74
    %s89 = sphi 0, %s75
    %s93 = sphi 0, %s93
    %s95 = sphi 0, %s93
    %s96 = sphi 0, %s95
    %s110 = sphi 0, %s96
    %s114 = sphi 0, %s114
    %s116 = sphi 0, %s114
    %s117 = sphi 0, %s116
    %s131 = sphi 0, %s117
    %s135 = sphi 0, %s135
    %s137 = sphi 0, %s135
    %s138 = sphi 0, %s137
    %s152 = sphi 0, %s138
    %s158 = sphi 0, %s160
    %s161 = sphi 0, %s158
    %s162 = sphi 0, %s161
    %s178 = sphi 0, %s162
    %s184 = sphi 0, %s186
    %s187 = sphi 0, %s184
    %s188 = sphi 0, %s187
    %s204 = sphi 0, %s188
    %s210 = sphi 0, %s212
    %s213 = sphi 0, %s210
    %s214 = sphi 0, %s213
    %s230 = sphi 0, %s214
    %s236 = sphi 0, %s238
    %s239 = sphi 0, %s236
    %s240 = sphi 0, %s239
    %s256 = sphi 0, %s240
    %s262 = sphi 0, %s264
    %s265 = sphi 0, %s262
    %s266 = sphi 0, %s265
    %s282 = sphi 0, %s266
  $region4: #{tpu_custom_call.1} parent=0 // loop_header_branch
    %20 = sbr.rel (%p18) target = $region8
  $region5: #{tpu_custom_call.1} parent=0 // loop_body
    %s22 = ssub.s32 %s17, 1
    %s23 = ssub.s32 %s17, 2
    %s24 = sadd.s32 %s17, 1
    %s25 = ssub.s32 %s17, %s24
    %p26 = scmp.eq.s32.totalorder %s25, 0
    %s28 = sadd.s32 %s27, 1
    %s29 = scalar_select %p26, %s27, %s28
    %p32 = pneg %p26
    %p33 = scmp.eq.s32.totalorder %s17, 3
    %p34 = por %p32, %p33
    %p35 = scmp.ne.s32.totalorder %s27, %s30
    %p36 = scmp.eq.s32.totalorder %s17, 0
    %p37 = por %p35, %p36
    %p38 = scmp.ne.s32.totalorder %s27, %s30
    %p39 = scmp.eq.s32.totalorder %s22, 3
    %p40 = por %p38, %p39
    %p41 = scmp.ne.s32.totalorder %s30, %s31
    %p42 = scmp.eq.s32.totalorder %s22, 0
    %p43 = por %p41, %p42
    %p44 = scmp.ne.s32.totalorder %s30, %s31
    %p45 = scmp.eq.s32.totalorder %s23, 3
    %p46 = por %p44, %p45
    %p48 = scmp.ne.s32.totalorder %s31, %s47
    %p49 = scmp.eq.s32.totalorder %s23, 0
    %p50 = por %p48, %p49
    %s52 = sadd.s32 %s51, 1
    %p55 = scmp.eq.s32.totalorder %s17, 3
    %p56 = scmp.ne.s32.totalorder %s51, %s53
    %p57 = scmp.eq.s32.totalorder %s17, 0
    %p58 = por %p56, %p57
    %p59 = scmp.ne.s32.totalorder %s51, %s53
    %p60 = scmp.eq.s32.totalorder %s22, 3
    %p61 = por %p59, %p60
    %p62 = scmp.ne.s32.totalorder %s53, %s54
    %p63 = scmp.eq.s32.totalorder %s22, 0
    %p64 = por %p62, %p63
    %p65 = scmp.ne.s32.totalorder %s53, %s54
    %p66 = scmp.eq.s32.totalorder %s23, 3
    %p67 = por %p65, %p66
    %p69 = scmp.ne.s32.totalorder %s54, %s68
    %p70 = scmp.eq.s32.totalorder %s23, 0
    %p71 = por %p69, %p70
    %s73 = sadd.s32 %s72, 1
    %p76 = scmp.eq.s32.totalorder %s17, 3
    %p77 = scmp.ne.s32.totalorder %s72, %s74
    %p78 = scmp.eq.s32.totalorder %s17, 0
    %p79 = por %p77, %p78
    %p80 = scmp.ne.s32.totalorder %s72, %s74
    %p81 = scmp.eq.s32.totalorder %s22, 3
    %p82 = por %p80, %p81
    %p83 = scmp.ne.s32.totalorder %s74, %s75
    %p84 = scmp.eq.s32.totalorder %s22, 0
    %p85 = por %p83, %p84
    %p86 = scmp.ne.s32.totalorder %s74, %s75
    %p87 = scmp.eq.s32.totalorder %s23, 3
    %p88 = por %p86, %p87
    %p90 = scmp.ne.s32.totalorder %s75, %s89
    %p91 = scmp.eq.s32.totalorder %s23, 0
    %p92 = por %p90, %p91
    %s94 = sadd.s32 %s93, 1
    %p97 = scmp.eq.s32.totalorder %s17, 3
    %p98 = scmp.ne.s32.totalorder %s93, %s95
    %p99 = scmp.eq.s32.totalorder %s17, 0
    %p100 = por %p98, %p99
    %p101 = scmp.ne.s32.totalorder %s93, %s95
    %p102 = scmp.eq.s32.totalorder %s22, 3
    %p103 = por %p101, %p102
    %p104 = scmp.ne.s32.totalorder %s95, %s96
    %p105 = scmp.eq.s32.totalorder %s22, 0
    %p106 = por %p104, %p105
    %p107 = scmp.ne.s32.totalorder %s95, %s96
    %p108 = scmp.eq.s32.totalorder %s23, 3
    %p109 = por %p107, %p108
    %p111 = scmp.ne.s32.totalorder %s96, %s110
    %p112 = scmp.eq.s32.totalorder %s23, 0
    %p113 = por %p111, %p112
    %s115 = sadd.s32 %s114, 1
    %p118 = scmp.eq.s32.totalorder %s17, 3
    %p119 = scmp.ne.s32.totalorder %s114, %s116
    %p120 = scmp.eq.s32.totalorder %s17, 0
    %p121 = por %p119, %p120
    %p122 = scmp.ne.s32.totalorder %s114, %s116
    %p123 = scmp.eq.s32.totalorder %s22, 3
    %p124 = por %p122, %p123
    %p125 = scmp.ne.s32.totalorder %s116, %s117
    %p126 = scmp.eq.s32.totalorder %s22, 0
    %p127 = por %p125, %p126
    %p128 = scmp.ne.s32.totalorder %s116, %s117
    %p129 = scmp.eq.s32.totalorder %s23, 3
    %p130 = por %p128, %p129
    %p132 = scmp.ne.s32.totalorder %s117, %s131
    %p133 = scmp.eq.s32.totalorder %s23, 0
    %p134 = por %p132, %p133
    %s136 = sadd.s32 %s135, 1
    %p139 = scmp.eq.s32.totalorder %s17, 3
    %p140 = scmp.ne.s32.totalorder %s135, %s137
    %p141 = scmp.eq.s32.totalorder %s17, 0
    %p142 = por %p140, %p141
    %p143 = scmp.ne.s32.totalorder %s135, %s137
    %p144 = scmp.eq.s32.totalorder %s22, 3
    %p145 = por %p143, %p144
    %p146 = scmp.ne.s32.totalorder %s137, %s138
    %p147 = scmp.eq.s32.totalorder %s22, 0
    %p148 = por %p146, %p147
    %p149 = scmp.ne.s32.totalorder %s137, %s138
    %p150 = scmp.eq.s32.totalorder %s23, 3
    %p151 = por %p149, %p150
    %p153 = scmp.ne.s32.totalorder %s138, %s152
    %p154 = scmp.eq.s32.totalorder %s23, 0
    %p155 = por %p153, %p154
    %s156 = ssub.s32 %s17, %s24
    %p157 = scmp.eq.s32.totalorder %s156, 0
    %s159 = sadd.s32 %s158, 1
    %s160 = scalar_select %p157, %s158, %s159
    %p163 = pneg %p157
    %p164 = scmp.eq.s32.totalorder %s17, 3
    %p165 = por %p163, %p164
    %p166 = scmp.ne.s32.totalorder %s158, %s161
    %p167 = scmp.eq.s32.totalorder %s17, 0
    %p168 = por %p166, %p167
    %p169 = scmp.ne.s32.totalorder %s158, %s161
    %p170 = scmp.eq.s32.totalorder %s22, 3
    %p171 = por %p169, %p170
    %p172 = scmp.ne.s32.totalorder %s161, %s162
    %p173 = scmp.eq.s32.totalorder %s22, 0
    %p174 = por %p172, %p173
    %p175 = scmp.ne.s32.totalorder %s161, %s162
    %p176 = scmp.eq.s32.totalorder %s23, 3
    %p177 = por %p175, %p176
    %p179 = scmp.ne.s32.totalorder %s162, %s178
    %p180 = scmp.eq.s32.totalorder %s23, 0
    %p181 = por %p179, %p180
    %s182 = ssub.s32 %s17, %s24
    %p183 = scmp.eq.s32.totalorder %s182, 0
    %s185 = sadd.s32 %s184, 1
    %s186 = scalar_select %p183, %s184, %s185
    %p189 = pneg %p183
    %p190 = scmp.eq.s32.totalorder %s17, 3
    %p191 = por %p189, %p190
    %p192 = scmp.ne.s32.totalorder %s184, %s187
    %p193 = scmp.eq.s32.totalorder %s17, 0
    %p194 = por %p192, %p193
    %p195 = scmp.ne.s32.totalorder %s184, %s187
    %p196 = scmp.eq.s32.totalorder %s22, 3
    %p197 = por %p195, %p196
    %p198 = scmp.ne.s32.totalorder %s187, %s188
    %p199 = scmp.eq.s32.totalorder %s22, 0
    %p200 = por %p198, %p199
    %p201 = scmp.ne.s32.totalorder %s187, %s188
    %p202 = scmp.eq.s32.totalorder %s23, 3
    %p203 = por %p201, %p202
    %p205 = scmp.ne.s32.totalorder %s188, %s204
    %p206 = scmp.eq.s32.totalorder %s23, 0
    %p207 = por %p205, %p206
    %s208 = ssub.s32 %s17, %s24
    %p209 = scmp.eq.s32.totalorder %s208, 0
    %s211 = sadd.s32 %s210, 1
    %s212 = scalar_select %p209, %s210, %s211
    %p215 = pneg %p209
    %p216 = scmp.eq.s32.totalorder %s17, 3
    %p217 = por %p215, %p216
    %p218 = scmp.ne.s32.totalorder %s210, %s213
    %p219 = scmp.eq.s32.totalorder %s17, 0
    %p220 = por %p218, %p219
    %p221 = scmp.ne.s32.totalorder %s210, %s213
    %p222 = scmp.eq.s32.totalorder %s22, 3
    %p223 = por %p221, %p222
    %p224 = scmp.ne.s32.totalorder %s213, %s214
    %p225 = scmp.eq.s32.totalorder %s22, 0
    %p226 = por %p224, %p225
    %p227 = scmp.ne.s32.totalorder %s213, %s214
    %p228 = scmp.eq.s32.totalorder %s23, 3
    %p229 = por %p227, %p228
    %p231 = scmp.ne.s32.totalorder %s214, %s230
    %p232 = scmp.eq.s32.totalorder %s23, 0
    %p233 = por %p231, %p232
    %s234 = ssub.s32 %s17, %s24
    %p235 = scmp.eq.s32.totalorder %s234, 0
    %s237 = sadd.s32 %s236, 1
    %s238 = scalar_select %p235, %s236, %s237
    %p241 = pneg %p235
    %p242 = scmp.eq.s32.totalorder %s17, 3
    %p243 = por %p241, %p242
    %p244 = scmp.ne.s32.totalorder %s236, %s239
    %p245 = scmp.eq.s32.totalorder %s17, 0
    %p246 = por %p244, %p245
    %p247 = scmp.ne.s32.totalorder %s236, %s239
    %p248 = scmp.eq.s32.totalorder %s22, 3
    %p249 = por %p247, %p248
    %p250 = scmp.ne.s32.totalorder %s239, %s240
    %p251 = scmp.eq.s32.totalorder %s22, 0
    %p252 = por %p250, %p251
    %p253 = scmp.ne.s32.totalorder %s239, %s240
    %p254 = scmp.eq.s32.totalorder %s23, 3
    %p255 = por %p253, %p254
    %p257 = scmp.ne.s32.totalorder %s240, %s256
    %p258 = scmp.eq.s32.totalorder %s23, 0
    %p259 = por %p257, %p258
    %s260 = ssub.s32 %s17, %s24
    %p261 = scmp.eq.s32.totalorder %s260, 0
    %s263 = sadd.s32 %s262, 1
    %s264 = scalar_select %p261, %s262, %s263
    %p267 = pneg %p261
    %p268 = scmp.eq.s32.totalorder %s17, 3
    %p269 = por %p267, %p268
    %p270 = scmp.ne.s32.totalorder %s262, %s265
    %p271 = scmp.eq.s32.totalorder %s17, 0
    %p272 = por %p270, %p271
    %p273 = scmp.ne.s32.totalorder %s262, %s265
    %p274 = scmp.eq.s32.totalorder %s22, 3
    %p275 = por %p273, %p274
    %p276 = scmp.ne.s32.totalorder %s265, %s266
    %p277 = scmp.eq.s32.totalorder %s22, 0
    %p278 = por %p276, %p277
    %p279 = scmp.ne.s32.totalorder %s265, %s266
    %p280 = scmp.eq.s32.totalorder %s23, 3
    %p281 = por %p279, %p280
    %p283 = scmp.ne.s32.totalorder %s266, %s282
    %p284 = scmp.eq.s32.totalorder %s23, 0
    %p285 = por %p283, %p284
    %p286 = scmp.le.s32.totalorder 1, %s17
    %p287 = scmp.lt.s32.totalorder %s17, 5
    %p288 = pnand %p286, %p287
    %p289 = pneg %p288
    // Predicated region
    $region9: #{tpu_custom_call.1} parent=5 // pred_check
      _
    $region10: #{tpu_custom_call.1} parent=5 // pred_check_branch
      %291 = sbr.rel (%p288) target = $region12
    $region11: #{tpu_custom_call.1} parent=5 // pred_region
      %s292 = ssub.s32 %s17, 1
      // Predicated region
      $region13: #{tpu_custom_call.1} parent=11 // pred_check
        %p293 = pneg %p64
      $region14: #{tpu_custom_call.1} parent=11 // pred_check_branch
        %295 = sbr.rel (%p293) target = $region16
      $region15: #{tpu_custom_call.1} parent=11 // pred_region
        _
      $region16: #{tpu_custom_call.1} parent=11 // pred_fallthru
        _
      // Predicated region
      $region17: #{tpu_custom_call.1} parent=11 // pred_check
        %p296 = pneg %p85
      $region18: #{tpu_custom_call.1} parent=11 // pred_check_branch
        %298 = sbr.rel (%p296) target = $region20
      $region19: #{tpu_custom_call.1} parent=11 // pred_region
        _
      $region20: #{tpu_custom_call.1} parent=11 // pred_fallthru
        _
      // Predicated region
      $region21: #{tpu_custom_call.1} parent=11 // pred_check
        %p299 = pneg %p106
      $region22: #{tpu_custom_call.1} parent=11 // pred_check_branch
        %301 = sbr.rel (%p299) target = $region24
      $region23: #{tpu_custom_call.1} parent=11 // pred_region
        _
      $region24: #{tpu_custom_call.1} parent=11 // pred_fallthru
        _
      // Predicated region
      $region25: #{tpu_custom_call.1} parent=11 // pred_check
        %p302 = pneg %p127
      $region26: #{tpu_custom_call.1} parent=11 // pred_check_branch
        %304 = sbr.rel (%p302) target = $region28
      $region27: #{tpu_custom_call.1} parent=11 // pred_region
        _
      $region28: #{tpu_custom_call.1} parent=11 // pred_fallthru
        _
      // Predicated region
      $region29: #{tpu_custom_call.1} parent=11 // pred_check
        %p305 = pneg %p148
      $region30: #{tpu_custom_call.1} parent=11 // pred_check_branch
        %307 = sbr.rel (%p305) target = $region32
      $region31: #{tpu_custom_call.1} parent=11 // pred_region
        _
      $region32: #{tpu_custom_call.1} parent=11 // pred_fallthru
        _
    $region12: #{tpu_custom_call.1} parent=5 // pred_fallthru
      _
    %p308 = scmp.lt.s32.totalorder %s17, 4
    // Predicated region
    $region33: #{tpu_custom_call.1} parent=5 // pred_check
      %p309 = pneg %p308
    $region34: #{tpu_custom_call.1} parent=5 // pred_check_branch
      %311 = sbr.rel (%p309) target = $region36
    $region35: #{tpu_custom_call.1} parent=5 // pred_region
      // Predicated region
      $region37: #{tpu_custom_call.1} parent=35 // pred_check
        %p312 = pneg %p37
      $region38: #{tpu_custom_call.1} parent=35 // pred_check_branch
        %314 = sbr.rel (%p312) target = $region40
      $region39: #{tpu_custom_call.1} parent=35 // pred_region
        %s315 = smul.u32 16, %s17
        %p316 = scmp.lt.s32.totalorder %s315, 63
        %s317 = scalar_select %p316, %s315, 63
        %s318 = smul.addr %s317, 8
        %s319 = scalar_lea.vmem %s0, %s318
        %s320 = smul.u32 16, %s17
      $region40: #{tpu_custom_call.1} parent=35 // pred_fallthru
        _
    $region36: #{tpu_custom_call.1} parent=5 // pred_fallthru
      _
    %p321 = scmp.le.s32.totalorder 1, %s17
    %p322 = scmp.lt.s32.totalorder %s17, 5
    %p323 = pnand %p321, %p322
    %p324 = pneg %p323
    // Predicated region
    $region41: #{tpu_custom_call.1} parent=5 // pred_check
      _
    $region42: #{tpu_custom_call.1} parent=5 // pred_check_branch
      %326 = sbr.rel (%p323) target = $region44
    $region43: #{tpu_custom_call.1} parent=5 // pred_region
      %s327 = ssub.s32 %s17, 1
      %s328 = smul.u32 16, %s22
      %p329 = scmp.lt.s32.totalorder %s328, 63
      %s330 = scalar_select %p329, %s328, 63
      %s331 = smul.addr %s330, 8
      %s332 = scalar_lea.vmem %s0, %s331
      %p333 = pneg %p43
      %p334 = pneg %p40
      %p335 = pneg %p64
      %p336 = pneg %p61
      %p337 = pneg %p85
      %p338 = pneg %p82
      %p339 = pneg %p106
      %p340 = pneg %p103
      %p341 = pneg %p127
      %p342 = pneg %p124
      %p343 = pneg %p148
      %p344 = pneg %p145
      %p345 = pneg %p174
      %p346 = pneg %p171
      %s347 = smul.u32 16, %s22
      %p348 = scmp.lt.s32.totalorder %s347, 63
      %s349 = scalar_select %p348, %s347, 63
      %s350 = smul.addr %s349, 8
      %s351 = scalar_lea.vmem %s6, %s350
      %p352 = pneg %p200
      %p353 = pneg %p197
      %s354 = smul.u32 16, %s22
      %p355 = scmp.lt.s32.totalorder %s354, 63
      %s356 = scalar_select %p355, %s354, 63
      %s357 = smul.addr %s356, 4
      %s358 = scalar_lea.vmem %s7, %s357
      %p359 = pneg %p226
      %p360 = pneg %p223
      %s361 = smul.u32 16, %s22
      %p362 = scmp.lt.s32.totalorder %s361, 63
      %s363 = scalar_select %p362, %s361, 63
      %s364 = smul.addr %s363, 8
      %s365 = scalar_lea.vmem %s8, %s364
      %p366 = pneg %p252
      %p367 = pneg %p249
      %s368 = smul.u32 16, %s22
      %p369 = scmp.lt.s32.totalorder %s368, 63
      %s370 = scalar_select %p369, %s368, 63
      %s371 = smul.addr %s370, 8
      %s372 = scalar_lea.vmem %s9, %s371
      %p373 = pneg %p278
      %p374 = pneg %p275
      %s375 = smul.u32 16, %s22
      %p376 = scmp.lt.s32.totalorder %s375, 63
      %s377 = scalar_select %p376, %s375, 63
      %s378 = smul.addr %s377, 8
      %s379 = scalar_lea.vmem %s10, %s378
      %s380 = smul.u32 16, %s22
      %p381 = scmp.lt.s32.totalorder %s380, 63
      %s382 = scalar_select %p381, %s380, 63
      %s383 = smul.addr %s382, 8
      %s384 = scalar_lea.vmem %s0, %s383
      %s385 = smul.u32 16, %s22
      %s386 = smul.u32 16, %s22
      %p387 = scmp.lt.s32.totalorder %s386, 63
      %s388 = scalar_select %p387, %s386, 63
      %s389 = smul.addr %s388, 8
      %s390 = scalar_lea.vmem %s6, %s389
      %s391 = smul.u32 16, %s22
      %s392 = smul.u32 16, %s22
      %p393 = scmp.lt.s32.totalorder %s392, 63
      %s394 = scalar_select %p393, %s392, 63
      %s395 = smul.addr %s394, 4
      %s396 = scalar_lea.vmem %s7, %s395
      %s397 = smul.u32 16, %s22
      %s398 = smul.u32 16, %s22
      %p399 = scmp.lt.s32.totalorder %s398, 63
      %s400 = scalar_select %p399, %s398, 63
      %s401 = smul.addr %s400, 8
      %s402 = scalar_lea.vmem %s8, %s401
      %s403 = smul.u32 16, %s22
      %s404 = smul.u32 16, %s22
      %p405 = scmp.lt.s32.totalorder %s404, 63
      %s406 = scalar_select %p405, %s404, 63
      %s407 = smul.addr %s406, 8
      %s408 = scalar_lea.vmem %s9, %s407
      %s409 = smul.u32 16, %s22
      %s410 = smul.u32 16, %s22
      %p411 = scmp.lt.s32.totalorder %s410, 63
      %s412 = scalar_select %p411, %s410, 63
      %s413 = smul.addr %s412, 8
      %s414 = scalar_lea.vmem %s10, %s413
      %s415 = smul.u32 16, %s22
      %v416 = vld [vmem:[%s384] sm:$0xff]
      %v417 = vld [vmem:[%s384 + $0x8] sm:$0xff]
      %v418 = vld [vmem:[%s384 + $0x10] sm:$0xff]
      %v419 = vld [vmem:[%s384 + $0x18] sm:$0xff]
      %v420 = vld [vmem:[%s384 + $0x20] sm:$0xff]
      %v421 = vld [vmem:[%s384 + $0x28] sm:$0xff]
      %v422 = vld [vmem:[%s384 + $0x30] sm:$0xff]
      %v423 = vld [vmem:[%s384 + $0x38] sm:$0xff]
      %v424 = vld [vmem:[%s384 + $0x40] sm:$0xff]
      %v425 = vld [vmem:[%s384 + $0x48] sm:$0xff]
      %v426 = vld [vmem:[%s384 + $0x50] sm:$0xff]
      %v427 = vld [vmem:[%s384 + $0x58] sm:$0xff]
      %v428 = vld [vmem:[%s384 + $0x60] sm:$0xff]
      %v429 = vld [vmem:[%s384 + $0x68] sm:$0xff]
      %v430 = vld [vmem:[%s384 + $0x70] sm:$0xff]
      %v431 = vld [vmem:[%s384 + $0x78] sm:$0xff]
      %v432 = vld [vmem:[%s1] sm:$0x1f]
      %v433 = vld [vmem:[%s3] sm:$0x1f]
      %v434 = vld [vmem:[%s5] sm:$0x1]
      %v435 = vld [vmem:[%s2] sm:$0x1]
      %437 = vset.pattern.permute.xlu0 0
      %438 = vperm.xlu0 %437, %v416
      %v439 = vpop.permute.xlu0 %438
      %442 = vset.pattern.permute.xlu0 0
      %443 = vperm.xlu0 %442, %v417
      %v444 = vpop.permute.xlu0 %443
      %447 = vset.pattern.permute.xlu0 0
      %448 = vperm.xlu0 %447, %v418
      %v449 = vpop.permute.xlu0 %448
      %452 = vset.pattern.permute.xlu0 0
      %453 = vperm.xlu0 %452, %v419
      %v454 = vpop.permute.xlu0 %453
      %457 = vset.pattern.permute.xlu0 0
      %458 = vperm.xlu0 %457, %v420
      %v459 = vpop.permute.xlu0 %458
      %462 = vset.pattern.permute.xlu0 0
      %463 = vperm.xlu0 %462, %v421
      %v464 = vpop.permute.xlu0 %463
      %467 = vset.pattern.permute.xlu0 0
      %468 = vperm.xlu0 %467, %v422
      %v469 = vpop.permute.xlu0 %468
      %472 = vset.pattern.permute.xlu0 0
      %473 = vperm.xlu0 %472, %v423
      %v474 = vpop.permute.xlu0 %473
      %477 = vset.pattern.permute.xlu0 0
      %478 = vperm.xlu0 %477, %v424
      %v479 = vpop.permute.xlu0 %478
      %482 = vset.pattern.permute.xlu0 0
      %483 = vperm.xlu0 %482, %v425
      %v484 = vpop.permute.xlu0 %483
      %487 = vset.pattern.permute.xlu0 0
      %488 = vperm.xlu0 %487, %v426
      %v489 = vpop.permute.xlu0 %488
      %492 = vset.pattern.permute.xlu0 0
      %493 = vperm.xlu0 %492, %v427
      %v494 = vpop.permute.xlu0 %493
      %497 = vset.pattern.permute.xlu0 0
      %498 = vperm.xlu0 %497, %v428
      %v499 = vpop.permute.xlu0 %498
      %502 = vset.pattern.permute.xlu0 0
      %503 = vperm.xlu0 %502, %v429
      %v504 = vpop.permute.xlu0 %503
      %507 = vset.pattern.permute.xlu0 0
      %508 = vperm.xlu0 %507, %v430
      %v509 = vpop.permute.xlu0 %508
      %512 = vset.pattern.permute.xlu0 0
      %513 = vperm.xlu0 %512, %v431
      %v514 = vpop.permute.xlu0 %513
      %v516 = vperm.slane %v432, 0
      %v517 = vmul.f32 %v439, %v516
      %v518 = vmul.f32 %v444, %v516
      %v519 = vmul.f32 %v449, %v516
      %v520 = vmul.f32 %v454, %v516
      %v521 = vmul.f32 %v459, %v516
      %v522 = vmul.f32 %v464, %v516
      %v523 = vmul.f32 %v469, %v516
      %v524 = vmul.f32 %v474, %v516
      %v525 = vmul.f32 %v479, %v516
      %v526 = vmul.f32 %v484, %v516
      %v527 = vmul.f32 %v489, %v516
      %v528 = vmul.f32 %v494, %v516
      %v529 = vmul.f32 %v499, %v516
      %v530 = vmul.f32 %v504, %v516
      %v531 = vmul.f32 %v509, %v516
      %v532 = vmul.f32 %v514, %v516
      %v534 = vperm.slane %v435, 0
      %v536 = vadd.f32 %v534, %v517
      %v537 = vadd.f32 %v534, %v518
      %v538 = vadd.f32 %v534, %v519
      %v539 = vadd.f32 %v534, %v520
      %v540 = vadd.f32 %v534, %v521
      %v541 = vadd.f32 %v534, %v522
      %v542 = vadd.f32 %v534, %v523
      %v543 = vadd.f32 %v534, %v524
      %v544 = vadd.f32 %v534, %v525
      %v545 = vadd.f32 %v534, %v526
      %v546 = vadd.f32 %v534, %v527
      %v547 = vadd.f32 %v534, %v528
      %v548 = vadd.f32 %v534, %v529
      %v549 = vadd.f32 %v534, %v530
      %v550 = vadd.f32 %v534, %v531
      %v551 = vadd.f32 %v534, %v532
      %v552 = vld [vmem:[%s4] sm:$0x1]
      %v553 = vperm.slane %v433, 0
      %v554 = vmul.f32 %v439, %v553
      %v555 = vmul.f32 %v444, %v553
      %v556 = vmul.f32 %v449, %v553
      %v557 = vmul.f32 %v454, %v553
      %v558 = vmul.f32 %v459, %v553
      %v559 = vmul.f32 %v464, %v553
      %v560 = vmul.f32 %v469, %v553
      %v561 = vmul.f32 %v474, %v553
      %v562 = vmul.f32 %v479, %v553
      %v563 = vmul.f32 %v484, %v553
      %v564 = vmul.f32 %v489, %v553
      %v565 = vmul.f32 %v494, %v553
      %v566 = vmul.f32 %v499, %v553
      %v567 = vmul.f32 %v504, %v553
      %v568 = vmul.f32 %v509, %v553
      %v569 = vmul.f32 %v514, %v553
      %v571 = vperm.slane %v552, 0
      %v573 = vadd.f32 %v571, %v554
      %v574 = vadd.f32 %v571, %v555
      %v575 = vadd.f32 %v571, %v556
      %v576 = vadd.f32 %v571, %v557
      %v577 = vadd.f32 %v571, %v558
      %v578 = vadd.f32 %v571, %v559
      %v579 = vadd.f32 %v571, %v560
      %v580 = vadd.f32 %v571, %v561
      %v581 = vadd.f32 %v571, %v562
      %v582 = vadd.f32 %v571, %v563
      %v583 = vadd.f32 %v571, %v564
      %v584 = vadd.f32 %v571, %v565
      %v585 = vadd.f32 %v571, %v566
      %v586 = vadd.f32 %v571, %v567
      %v587 = vadd.f32 %v571, %v568
      %v588 = vadd.f32 %v571, %v569
      %589 = vset.pattern.permute.xlu0 1
      %590 = vperm.xlu0 %589, %v416
      %v591 = vpop.permute.xlu0 %590
      %593 = vset.pattern.permute.xlu0 1
      %594 = vperm.xlu0 %593, %v417
      %v595 = vpop.permute.xlu0 %594
      %597 = vset.pattern.permute.xlu0 1
      %598 = vperm.xlu0 %597, %v418
      %v599 = vpop.permute.xlu0 %598
      %601 = vset.pattern.permute.xlu0 1
      %602 = vperm.xlu0 %601, %v419
      %v603 = vpop.permute.xlu0 %602
      %605 = vset.pattern.permute.xlu0 1
      %606 = vperm.xlu0 %605, %v420
      %v607 = vpop.permute.xlu0 %606
      %609 = vset.pattern.permute.xlu0 1
      %610 = vperm.xlu0 %609, %v421
      %v611 = vpop.permute.xlu0 %610
      %613 = vset.pattern.permute.xlu0 1
      %614 = vperm.xlu0 %613, %v422
      %v615 = vpop.permute.xlu0 %614
      %617 = vset.pattern.permute.xlu0 1
      %618 = vperm.xlu0 %617, %v423
      %v619 = vpop.permute.xlu0 %618
      %621 = vset.pattern.permute.xlu0 1
      %622 = vperm.xlu0 %621, %v424
      %v623 = vpop.permute.xlu0 %622
      %625 = vset.pattern.permute.xlu0 1
      %626 = vperm.xlu0 %625, %v425
      %v627 = vpop.permute.xlu0 %626
      %629 = vset.pattern.permute.xlu0 1
      %630 = vperm.xlu0 %629, %v426
      %v631 = vpop.permute.xlu0 %630
      %633 = vset.pattern.permute.xlu0 1
      %634 = vperm.xlu0 %633, %v427
      %v635 = vpop.permute.xlu0 %634
      %637 = vset.pattern.permute.xlu0 1
      %638 = vperm.xlu0 %637, %v428
      %v639 = vpop.permute.xlu0 %638
      %641 = vset.pattern.permute.xlu0 1
      %642 = vperm.xlu0 %641, %v429
      %v643 = vpop.permute.xlu0 %642
      %645 = vset.pattern.permute.xlu0 1
      %646 = vperm.xlu0 %645, %v430
      %v647 = vpop.permute.xlu0 %646
      %649 = vset.pattern.permute.xlu0 1
      %650 = vperm.xlu0 %649, %v431
      %v651 = vpop.permute.xlu0 %650
      %v653 = vperm.slane %v432, 1
      %v654 = vmul.f32 %v591, %v653
      %v655 = vmul.f32 %v595, %v653
      %v656 = vmul.f32 %v599, %v653
      %v657 = vmul.f32 %v603, %v653
      %v658 = vmul.f32 %v607, %v653
      %v659 = vmul.f32 %v611, %v653
      %v660 = vmul.f32 %v615, %v653
      %v661 = vmul.f32 %v619, %v653
      %v662 = vmul.f32 %v623, %v653
      %v663 = vmul.f32 %v627, %v653
      %v664 = vmul.f32 %v631, %v653
      %v665 = vmul.f32 %v635, %v653
      %v666 = vmul.f32 %v639, %v653
      %v667 = vmul.f32 %v643, %v653
      %v668 = vmul.f32 %v647, %v653
      %v669 = vmul.f32 %v651, %v653
      %v670 = vadd.f32 %v536, %v654
      %v671 = vadd.f32 %v537, %v655
      %v672 = vadd.f32 %v538, %v656
      %v673 = vadd.f32 %v539, %v657
      %v674 = vadd.f32 %v540, %v658
      %v675 = vadd.f32 %v541, %v659
      %v676 = vadd.f32 %v542, %v660
      %v677 = vadd.f32 %v543, %v661
      %v678 = vadd.f32 %v544, %v662
      %v679 = vadd.f32 %v545, %v663
      %v680 = vadd.f32 %v546, %v664
      %v681 = vadd.f32 %v547, %v665
      %v682 = vadd.f32 %v548, %v666
      %v683 = vadd.f32 %v549, %v667
      %v684 = vadd.f32 %v550, %v668
      %v685 = vadd.f32 %v551, %v669
      %v686 = vperm.slane %v433, 1
      %v687 = vmul.f32 %v591, %v686
      %v688 = vmul.f32 %v595, %v686
      %v689 = vmul.f32 %v599, %v686
      %v690 = vmul.f32 %v603, %v686
      %v691 = vmul.f32 %v607, %v686
      %v692 = vmul.f32 %v611, %v686
      %v693 = vmul.f32 %v615, %v686
      %v694 = vmul.f32 %v619, %v686
      %v695 = vmul.f32 %v623, %v686
      %v696 = vmul.f32 %v627, %v686
      %v697 = vmul.f32 %v631, %v686
      %v698 = vmul.f32 %v635, %v686
      %v699 = vmul.f32 %v639, %v686
      %v700 = vmul.f32 %v643, %v686
      %v701 = vmul.f32 %v647, %v686
      %v702 = vmul.f32 %v651, %v686
      %v703 = vadd.f32 %v573, %v687
      %v704 = vadd.f32 %v574, %v688
      %v705 = vadd.f32 %v575, %v689
      %v706 = vadd.f32 %v576, %v690
      %v707 = vadd.f32 %v577, %v691
      %v708 = vadd.f32 %v578, %v692
      %v709 = vadd.f32 %v579, %v693
      %v710 = vadd.f32 %v580, %v694
      %v711 = vadd.f32 %v581, %v695
      %v712 = vadd.f32 %v582, %v696
      %v713 = vadd.f32 %v583, %v697
      %v714 = vadd.f32 %v584, %v698
      %v715 = vadd.f32 %v585, %v699
      %v716 = vadd.f32 %v586, %v700
      %v717 = vadd.f32 %v587, %v701
      %v718 = vadd.f32 %v588, %v702
      %719 = vset.pattern.permute.xlu0 2
      %720 = vperm.xlu0 %719, %v416
      %v721 = vpop.permute.xlu0 %720
      %723 = vset.pattern.permute.xlu0 2
      %724 = vperm.xlu0 %723, %v417
      %v725 = vpop.permute.xlu0 %724
      %727 = vset.pattern.permute.xlu0 2
      %728 = vperm.xlu0 %727, %v418
      %v729 = vpop.permute.xlu0 %728
      %731 = vset.pattern.permute.xlu0 2
      %732 = vperm.xlu0 %731, %v419
      %v733 = vpop.permute.xlu0 %732
      %735 = vset.pattern.permute.xlu0 2
      %736 = vperm.xlu0 %735, %v420
      %v737 = vpop.permute.xlu0 %736
      %739 = vset.pattern.permute.xlu0 2
      %740 = vperm.xlu0 %739, %v421
      %v741 = vpop.permute.xlu0 %740
      %743 = vset.pattern.permute.xlu0 2
      %744 = vperm.xlu0 %743, %v422
      %v745 = vpop.permute.xlu0 %744
      %747 = vset.pattern.permute.xlu0 2
      %748 = vperm.xlu0 %747, %v423
      %v749 = vpop.permute.xlu0 %748
      %751 = vset.pattern.permute.xlu0 2
      %752 = vperm.xlu0 %751, %v424
      %v753 = vpop.permute.xlu0 %752
      %755 = vset.pattern.permute.xlu0 2
      %756 = vperm.xlu0 %755, %v425
      %v757 = vpop.permute.xlu0 %756
      %759 = vset.pattern.permute.xlu0 2
      %760 = vperm.xlu0 %759, %v426
      %v761 = vpop.permute.xlu0 %760
      %763 = vset.pattern.permute.xlu0 2
      %764 = vperm.xlu0 %763, %v427
      %v765 = vpop.permute.xlu0 %764
      %767 = vset.pattern.permute.xlu0 2
      %768 = vperm.xlu0 %767, %v428
      %v769 = vpop.permute.xlu0 %768
      %771 = vset.pattern.permute.xlu0 2
      %772 = vperm.xlu0 %771, %v429
      %v773 = vpop.permute.xlu0 %772
      %775 = vset.pattern.permute.xlu0 2
      %776 = vperm.xlu0 %775, %v430
      %v777 = vpop.permute.xlu0 %776
      %779 = vset.pattern.permute.xlu0 2
      %780 = vperm.xlu0 %779, %v431
      %v781 = vpop.permute.xlu0 %780
      %v783 = vperm.slane %v432, 2
      %v784 = vmul.f32 %v721, %v783
      %v785 = vmul.f32 %v725, %v783
      %v786 = vmul.f32 %v729, %v783
      %v787 = vmul.f32 %v733, %v783
      %v788 = vmul.f32 %v737, %v783
      %v789 = vmul.f32 %v741, %v783
      %v790 = vmul.f32 %v745, %v783
      %v791 = vmul.f32 %v749, %v783
      %v792 = vmul.f32 %v753, %v783
      %v793 = vmul.f32 %v757, %v783
      %v794 = vmul.f32 %v761, %v783
      %v795 = vmul.f32 %v765, %v783
      %v796 = vmul.f32 %v769, %v783
      %v797 = vmul.f32 %v773, %v783
      %v798 = vmul.f32 %v777, %v783
      %v799 = vmul.f32 %v781, %v783
      %v800 = vadd.f32 %v670, %v784
      %v801 = vadd.f32 %v671, %v785
      %v802 = vadd.f32 %v672, %v786
      %v803 = vadd.f32 %v673, %v787
      %v804 = vadd.f32 %v674, %v788
      %v805 = vadd.f32 %v675, %v789
      %v806 = vadd.f32 %v676, %v790
      %v807 = vadd.f32 %v677, %v791
      %v808 = vadd.f32 %v678, %v792
      %v809 = vadd.f32 %v679, %v793
      %v810 = vadd.f32 %v680, %v794
      %v811 = vadd.f32 %v681, %v795
      %v812 = vadd.f32 %v682, %v796
      %v813 = vadd.f32 %v683, %v797
      %v814 = vadd.f32 %v684, %v798
      %v815 = vadd.f32 %v685, %v799
      %v816 = vperm.slane %v433, 2
      %v817 = vmul.f32 %v721, %v816
      %v818 = vmul.f32 %v725, %v816
      %v819 = vmul.f32 %v729, %v816
      %v820 = vmul.f32 %v733, %v816
      %v821 = vmul.f32 %v737, %v816
      %v822 = vmul.f32 %v741, %v816
      %v823 = vmul.f32 %v745, %v816
      %v824 = vmul.f32 %v749, %v816
      %v825 = vmul.f32 %v753, %v816
      %v826 = vmul.f32 %v757, %v816
      %v827 = vmul.f32 %v761, %v816
      %v828 = vmul.f32 %v765, %v816
      %v829 = vmul.f32 %v769, %v816
      %v830 = vmul.f32 %v773, %v816
      %v831 = vmul.f32 %v777, %v816
      %v832 = vmul.f32 %v781, %v816
      %v833 = vadd.f32 %v703, %v817
      %v834 = vadd.f32 %v704, %v818
      %v835 = vadd.f32 %v705, %v819
      %v836 = vadd.f32 %v706, %v820
      %v837 = vadd.f32 %v707, %v821
      %v838 = vadd.f32 %v708, %v822
      %v839 = vadd.f32 %v709, %v823
      %v840 = vadd.f32 %v710, %v824
      %v841 = vadd.f32 %v711, %v825
      %v842 = vadd.f32 %v712, %v826
      %v843 = vadd.f32 %v713, %v827
      %v844 = vadd.f32 %v714, %v828
      %v845 = vadd.f32 %v715, %v829
      %v846 = vadd.f32 %v716, %v830
      %v847 = vadd.f32 %v717, %v831
      %v848 = vadd.f32 %v718, %v832
      %849 = vset.pattern.permute.xlu0 3
      %850 = vperm.xlu0 %849, %v416
      %v851 = vpop.permute.xlu0 %850
      %853 = vset.pattern.permute.xlu0 3
      %854 = vperm.xlu0 %853, %v417
      %v855 = vpop.permute.xlu0 %854
      %857 = vset.pattern.permute.xlu0 3
      %858 = vperm.xlu0 %857, %v418
      %v859 = vpop.permute.xlu0 %858
      %861 = vset.pattern.permute.xlu0 3
      %862 = vperm.xlu0 %861, %v419
      %v863 = vpop.permute.xlu0 %862
      %865 = vset.pattern.permute.xlu0 3
      %866 = vperm.xlu0 %865, %v420
      %v867 = vpop.permute.xlu0 %866
      %869 = vset.pattern.permute.xlu0 3
      %870 = vperm.xlu0 %869, %v421
      %v871 = vpop.permute.xlu0 %870
      %873 = vset.pattern.permute.xlu0 3
      %874 = vperm.xlu0 %873, %v422
      %v875 = vpop.permute.xlu0 %874
      %877 = vset.pattern.permute.xlu0 3
      %878 = vperm.xlu0 %877, %v423
      %v879 = vpop.permute.xlu0 %878
      %881 = vset.pattern.permute.xlu0 3
      %882 = vperm.xlu0 %881, %v424
      %v883 = vpop.permute.xlu0 %882
      %885 = vset.pattern.permute.xlu0 3
      %886 = vperm.xlu0 %885, %v425
      %v887 = vpop.permute.xlu0 %886
      %889 = vset.pattern.permute.xlu0 3
      %890 = vperm.xlu0 %889, %v426
      %v891 = vpop.permute.xlu0 %890
      %893 = vset.pattern.permute.xlu0 3
      %894 = vperm.xlu0 %893, %v427
      %v895 = vpop.permute.xlu0 %894
      %897 = vset.pattern.permute.xlu0 3
      %898 = vperm.xlu0 %897, %v428
      %v899 = vpop.permute.xlu0 %898
      %901 = vset.pattern.permute.xlu0 3
      %902 = vperm.xlu0 %901, %v429
      %v903 = vpop.permute.xlu0 %902
      %905 = vset.pattern.permute.xlu0 3
      %906 = vperm.xlu0 %905, %v430
      %v907 = vpop.permute.xlu0 %906
      %909 = vset.pattern.permute.xlu0 3
      %910 = vperm.xlu0 %909, %v431
      %v911 = vpop.permute.xlu0 %910
      %v913 = vperm.slane %v432, 3
      %v914 = vmul.f32 %v851, %v913
      %v915 = vmul.f32 %v855, %v913
      %v916 = vmul.f32 %v859, %v913
      %v917 = vmul.f32 %v863, %v913
      %v918 = vmul.f32 %v867, %v913
      %v919 = vmul.f32 %v871, %v913
      %v920 = vmul.f32 %v875, %v913
      %v921 = vmul.f32 %v879, %v913
      %v922 = vmul.f32 %v883, %v913
      %v923 = vmul.f32 %v887, %v913
      %v924 = vmul.f32 %v891, %v913
      %v925 = vmul.f32 %v895, %v913
      %v926 = vmul.f32 %v899, %v913
      %v927 = vmul.f32 %v903, %v913
      %v928 = vmul.f32 %v907, %v913
      %v929 = vmul.f32 %v911, %v913
      %v930 = vadd.f32 %v800, %v914
      %v931 = vadd.f32 %v801, %v915
      %v932 = vadd.f32 %v802, %v916
      %v933 = vadd.f32 %v803, %v917
      %v934 = vadd.f32 %v804, %v918
      %v935 = vadd.f32 %v805, %v919
      %v936 = vadd.f32 %v806, %v920
      %v937 = vadd.f32 %v807, %v921
      %v938 = vadd.f32 %v808, %v922
      %v939 = vadd.f32 %v809, %v923
      %v940 = vadd.f32 %v810, %v924
      %v941 = vadd.f32 %v811, %v925
      %v942 = vadd.f32 %v812, %v926
      %v943 = vadd.f32 %v813, %v927
      %v944 = vadd.f32 %v814, %v928
      %v945 = vadd.f32 %v815, %v929
      %v946 = vperm.slane %v433, 3
      %v947 = vmul.f32 %v851, %v946
      %v948 = vmul.f32 %v855, %v946
      %v949 = vmul.f32 %v859, %v946
      %v950 = vmul.f32 %v863, %v946
      %v951 = vmul.f32 %v867, %v946
      %v952 = vmul.f32 %v871, %v946
      %v953 = vmul.f32 %v875, %v946
      %v954 = vmul.f32 %v879, %v946
      %v955 = vmul.f32 %v883, %v946
      %v956 = vmul.f32 %v887, %v946
      %v957 = vmul.f32 %v891, %v946
      %v958 = vmul.f32 %v895, %v946
      %v959 = vmul.f32 %v899, %v946
      %v960 = vmul.f32 %v903, %v946
      %v961 = vmul.f32 %v907, %v946
      %v962 = vmul.f32 %v911, %v946
      %v963 = vadd.f32 %v833, %v947
      %v964 = vadd.f32 %v834, %v948
      %v965 = vadd.f32 %v835, %v949
      %v966 = vadd.f32 %v836, %v950
      %v967 = vadd.f32 %v837, %v951
      %v968 = vadd.f32 %v838, %v952
      %v969 = vadd.f32 %v839, %v953
      %v970 = vadd.f32 %v840, %v954
      %v971 = vadd.f32 %v841, %v955
      %v972 = vadd.f32 %v842, %v956
      %v973 = vadd.f32 %v843, %v957
      %v974 = vadd.f32 %v844, %v958
      %v975 = vadd.f32 %v845, %v959
      %v976 = vadd.f32 %v846, %v960
      %v977 = vadd.f32 %v847, %v961
      %v978 = vadd.f32 %v848, %v962
      %979 = vset.pattern.permute.xlu0 4
      %980 = vperm.xlu0 %979, %v416
      %v981 = vpop.permute.xlu0 %980
      %983 = vset.pattern.permute.xlu0 4
      %984 = vperm.xlu0 %983, %v417
      %v985 = vpop.permute.xlu0 %984
      %987 = vset.pattern.permute.xlu0 4
      %988 = vperm.xlu0 %987, %v418
      %v989 = vpop.permute.xlu0 %988
      %991 = vset.pattern.permute.xlu0 4
      %992 = vperm.xlu0 %991, %v419
      %v993 = vpop.permute.xlu0 %992
      %995 = vset.pattern.permute.xlu0 4
      %996 = vperm.xlu0 %995, %v420
      %v997 = vpop.permute.xlu0 %996
      %999 = vset.pattern.permute.xlu0 4
      %1000 = vperm.xlu0 %999, %v421
      %v1001 = vpop.permute.xlu0 %1000
      %1003 = vset.pattern.permute.xlu0 4
      %1004 = vperm.xlu0 %1003, %v422
      %v1005 = vpop.permute.xlu0 %1004
      %1007 = vset.pattern.permute.xlu0 4
      %1008 = vperm.xlu0 %1007, %v423
      %v1009 = vpop.permute.xlu0 %1008
      %1011 = vset.pattern.permute.xlu0 4
      %1012 = vperm.xlu0 %1011, %v424
      %v1013 = vpop.permute.xlu0 %1012
      %1015 = vset.pattern.permute.xlu0 4
      %1016 = vperm.xlu0 %1015, %v425
      %v1017 = vpop.permute.xlu0 %1016
      %1019 = vset.pattern.permute.xlu0 4
      %1020 = vperm.xlu0 %1019, %v426
      %v1021 = vpop.permute.xlu0 %1020
      %1023 = vset.pattern.permute.xlu0 4
      %1024 = vperm.xlu0 %1023, %v427
      %v1025 = vpop.permute.xlu0 %1024
      %1027 = vset.pattern.permute.xlu0 4
      %1028 = vperm.xlu0 %1027, %v428
      %v1029 = vpop.permute.xlu0 %1028
      %1031 = vset.pattern.permute.xlu0 4
      %1032 = vperm.xlu0 %1031, %v429
      %v1033 = vpop.permute.xlu0 %1032
      %1035 = vset.pattern.permute.xlu0 4
      %1036 = vperm.xlu0 %1035, %v430
      %v1037 = vpop.permute.xlu0 %1036
      %1039 = vset.pattern.permute.xlu0 4
      %1040 = vperm.xlu0 %1039, %v431
      %v1041 = vpop.permute.xlu0 %1040
      %v1043 = vperm.slane %v432, 4
      %v1044 = vmul.f32 %v981, %v1043
      %v1045 = vmul.f32 %v985, %v1043
      %v1046 = vmul.f32 %v989, %v1043
      %v1047 = vmul.f32 %v993, %v1043
      %v1048 = vmul.f32 %v997, %v1043
      %v1049 = vmul.f32 %v1001, %v1043
      %v1050 = vmul.f32 %v1005, %v1043
      %v1051 = vmul.f32 %v1009, %v1043
      %v1052 = vmul.f32 %v1013, %v1043
      %v1053 = vmul.f32 %v1017, %v1043
      %v1054 = vmul.f32 %v1021, %v1043
      %v1055 = vmul.f32 %v1025, %v1043
      %v1056 = vmul.f32 %v1029, %v1043
      %v1057 = vmul.f32 %v1033, %v1043
      %v1058 = vmul.f32 %v1037, %v1043
      %v1059 = vmul.f32 %v1041, %v1043
      %v1060 = vadd.f32 %v930, %v1044
      %v1061 = vadd.f32 %v931, %v1045
      %v1062 = vadd.f32 %v932, %v1046
      %v1063 = vadd.f32 %v933, %v1047
      %v1064 = vadd.f32 %v934, %v1048
      %v1065 = vadd.f32 %v935, %v1049
      %v1066 = vadd.f32 %v936, %v1050
      %v1067 = vadd.f32 %v937, %v1051
      %v1068 = vadd.f32 %v938, %v1052
      %v1069 = vadd.f32 %v939, %v1053
      %v1070 = vadd.f32 %v940, %v1054
      %v1071 = vadd.f32 %v941, %v1055
      %v1072 = vadd.f32 %v942, %v1056
      %v1073 = vadd.f32 %v943, %v1057
      %v1074 = vadd.f32 %v944, %v1058
      %v1075 = vadd.f32 %v945, %v1059
      %v1076 = vperm.slane %v433, 4
      %v1077 = vmul.f32 %v981, %v1076
      %v1078 = vmul.f32 %v985, %v1076
      %v1079 = vmul.f32 %v989, %v1076
      %v1080 = vmul.f32 %v993, %v1076
      %v1081 = vmul.f32 %v997, %v1076
      %v1082 = vmul.f32 %v1001, %v1076
      %v1083 = vmul.f32 %v1005, %v1076
      %v1084 = vmul.f32 %v1009, %v1076
      %v1085 = vmul.f32 %v1013, %v1076
      %v1086 = vmul.f32 %v1017, %v1076
      %v1087 = vmul.f32 %v1021, %v1076
      %v1088 = vmul.f32 %v1025, %v1076
      %v1089 = vmul.f32 %v1029, %v1076
      %v1090 = vmul.f32 %v1033, %v1076
      %v1091 = vmul.f32 %v1037, %v1076
      %v1092 = vmul.f32 %v1041, %v1076
      %v1093 = vadd.f32 %v963, %v1077
      %v1094 = vadd.f32 %v964, %v1078
      %v1095 = vadd.f32 %v965, %v1079
      %v1096 = vadd.f32 %v966, %v1080
      %v1097 = vadd.f32 %v967, %v1081
      %v1098 = vadd.f32 %v968, %v1082
      %v1099 = vadd.f32 %v969, %v1083
      %v1100 = vadd.f32 %v970, %v1084
      %v1101 = vadd.f32 %v971, %v1085
      %v1102 = vadd.f32 %v972, %v1086
      %v1103 = vadd.f32 %v973, %v1087
      %v1104 = vadd.f32 %v974, %v1088
      %v1105 = vadd.f32 %v975, %v1089
      %v1106 = vadd.f32 %v976, %v1090
      %v1107 = vadd.f32 %v977, %v1091
      %v1108 = vadd.f32 %v978, %v1092
      %vm1109 = vcmask 261120
      %1110 = vst.msk [vmem:[%s390] sm:$0xff] %vm1109, %v1060
      %1111 = vst.msk [vmem:[%s390 + $0x8] sm:$0xff] %vm1109, %v1061
      %1112 = vst.msk [vmem:[%s390 + $0x10] sm:$0xff] %vm1109, %v1062
      %1113 = vst.msk [vmem:[%s390 + $0x18] sm:$0xff] %vm1109, %v1063
      %1114 = vst.msk [vmem:[%s390 + $0x20] sm:$0xff] %vm1109, %v1064
      %1115 = vst.msk [vmem:[%s390 + $0x28] sm:$0xff] %vm1109, %v1065
      %1116 = vst.msk [vmem:[%s390 + $0x30] sm:$0xff] %vm1109, %v1066
      %1117 = vst.msk [vmem:[%s390 + $0x38] sm:$0xff] %vm1109, %v1067
      %1118 = vst.msk [vmem:[%s390 + $0x40] sm:$0xff] %vm1109, %v1068
      %1119 = vst.msk [vmem:[%s390 + $0x48] sm:$0xff] %vm1109, %v1069
      %1120 = vst.msk [vmem:[%s390 + $0x50] sm:$0xff] %vm1109, %v1070
      %1121 = vst.msk [vmem:[%s390 + $0x58] sm:$0xff] %vm1109, %v1071
      %1122 = vst.msk [vmem:[%s390 + $0x60] sm:$0xff] %vm1109, %v1072
      %1123 = vst.msk [vmem:[%s390 + $0x68] sm:$0xff] %vm1109, %v1073
      %1124 = vst.msk [vmem:[%s390 + $0x70] sm:$0xff] %vm1109, %v1074
      %1125 = vst.msk [vmem:[%s390 + $0x78] sm:$0xff] %vm1109, %v1075
      %v1126 = vpack.c.bf16 %v1060, %v1060
      %v1127 = vpack.c.bf16 %v1061, %v1061
      %v1128 = vpack.c.bf16 %v1062, %v1062
      %v1129 = vpack.c.bf16 %v1063, %v1063
      %v1130 = vpack.c.bf16 %v1064, %v1064
      %v1131 = vpack.c.bf16 %v1065, %v1065
      %v1132 = vpack.c.bf16 %v1066, %v1066
      %v1133 = vpack.c.bf16 %v1067, %v1067
      %v1134 = vpack.c.bf16 %v1068, %v1068
      %v1135 = vpack.c.bf16 %v1069, %v1069
      %v1136 = vpack.c.bf16 %v1070, %v1070
      %v1137 = vpack.c.bf16 %v1071, %v1071
      %v1138 = vpack.c.bf16 %v1072, %v1072
      %v1139 = vpack.c.bf16 %v1073, %v1073
      %v1140 = vpack.c.bf16 %v1074, %v1074
      %v1141 = vpack.c.bf16 %v1075, %v1075
      %vm1142 = vcmask 257024
      %1143 = vst.msk [vmem:[%s396] sm:$0xf] %vm1142, %v1126
      %1144 = vst.msk [vmem:[%s396 + $0x4] sm:$0xf] %vm1142, %v1127
      %1145 = vst.msk [vmem:[%s396 + $0x8] sm:$0xf] %vm1142, %v1128
      %1146 = vst.msk [vmem:[%s396 + $0xc] sm:$0xf] %vm1142, %v1129
      %1147 = vst.msk [vmem:[%s396 + $0x10] sm:$0xf] %vm1142, %v1130
      %1148 = vst.msk [vmem:[%s396 + $0x14] sm:$0xf] %vm1142, %v1131
      %1149 = vst.msk [vmem:[%s396 + $0x18] sm:$0xf] %vm1142, %v1132
      %1150 = vst.msk [vmem:[%s396 + $0x1c] sm:$0xf] %vm1142, %v1133
      %1151 = vst.msk [vmem:[%s396 + $0x20] sm:$0xf] %vm1142, %v1134
      %1152 = vst.msk [vmem:[%s396 + $0x24] sm:$0xf] %vm1142, %v1135
      %1153 = vst.msk [vmem:[%s396 + $0x28] sm:$0xf] %vm1142, %v1136
      %1154 = vst.msk [vmem:[%s396 + $0x2c] sm:$0xf] %vm1142, %v1137
      %1155 = vst.msk [vmem:[%s396 + $0x30] sm:$0xf] %vm1142, %v1138
      %1156 = vst.msk [vmem:[%s396 + $0x34] sm:$0xf] %vm1142, %v1139
      %1157 = vst.msk [vmem:[%s396 + $0x38] sm:$0xf] %vm1142, %v1140
      %1158 = vst.msk [vmem:[%s396 + $0x3c] sm:$0xf] %vm1142, %v1141
      %1159 = vst.msk [vmem:[%s402] sm:$0xff] %vm1109, %v1093
      %1160 = vst.msk [vmem:[%s402 + $0x8] sm:$0xff] %vm1109, %v1094
      %1161 = vst.msk [vmem:[%s402 + $0x10] sm:$0xff] %vm1109, %v1095
      %1162 = vst.msk [vmem:[%s402 + $0x18] sm:$0xff] %vm1109, %v1096
      %1163 = vst.msk [vmem:[%s402 + $0x20] sm:$0xff] %vm1109, %v1097
      %1164 = vst.msk [vmem:[%s402 + $0x28] sm:$0xff] %vm1109, %v1098
      %1165 = vst.msk [vmem:[%s402 + $0x30] sm:$0xff] %vm1109, %v1099
      %1166 = vst.msk [vmem:[%s402 + $0x38] sm:$0xff] %vm1109, %v1100
      %1167 = vst.msk [vmem:[%s402 + $0x40] sm:$0xff] %vm1109, %v1101
      %1168 = vst.msk [vmem:[%s402 + $0x48] sm:$0xff] %vm1109, %v1102
      %1169 = vst.msk [vmem:[%s402 + $0x50] sm:$0xff] %vm1109, %v1103
      %1170 = vst.msk [vmem:[%s402 + $0x58] sm:$0xff] %vm1109, %v1104
      %1171 = vst.msk [vmem:[%s402 + $0x60] sm:$0xff] %vm1109, %v1105
      %1172 = vst.msk [vmem:[%s402 + $0x68] sm:$0xff] %vm1109, %v1106
      %1173 = vst.msk [vmem:[%s402 + $0x70] sm:$0xff] %vm1109, %v1107
      %1174 = vst.msk [vmem:[%s402 + $0x78] sm:$0xff] %vm1109, %v1108
      %v1176 = vperm.slane %v434, 0
      %v1178 = vmul.f32 %v1060, %v1176
      %v1179 = vmul.f32 %v1061, %v1176
      %v1180 = vmul.f32 %v1062, %v1176
      %v1181 = vmul.f32 %v1063, %v1176
      %v1182 = vmul.f32 %v1064, %v1176
      %v1183 = vmul.f32 %v1065, %v1176
      %v1184 = vmul.f32 %v1066, %v1176
      %v1185 = vmul.f32 %v1067, %v1176
      %v1186 = vmul.f32 %v1068, %v1176
      %v1187 = vmul.f32 %v1069, %v1176
      %v1188 = vmul.f32 %v1070, %v1176
      %v1189 = vmul.f32 %v1071, %v1176
      %v1190 = vmul.f32 %v1072, %v1176
      %v1191 = vmul.f32 %v1073, %v1176
      %v1192 = vmul.f32 %v1074, %v1176
      %v1193 = vmul.f32 %v1075, %v1176
      %v1194 = vsel %vm1109, %v1178, 0.0
      %1195 = vadd.xlane.f32.xlu0 %v1194
      %v1196 = vpop.xlane.xlu0 %1195
      %v1197 = vsel %vm1109, %v1179, 0.0
      %1198 = vadd.xlane.f32.xlu0 %v1197
      %v1199 = vpop.xlane.xlu0 %1198
      %v1200 = vsel %vm1109, %v1180, 0.0
      %1201 = vadd.xlane.f32.xlu0 %v1200
      %v1202 = vpop.xlane.xlu0 %1201
      %v1203 = vsel %vm1109, %v1181, 0.0
      %1204 = vadd.xlane.f32.xlu0 %v1203
      %v1205 = vpop.xlane.xlu0 %1204
      %v1206 = vsel %vm1109, %v1182, 0.0
      %1207 = vadd.xlane.f32.xlu0 %v1206
      %v1208 = vpop.xlane.xlu0 %1207
      %v1209 = vsel %vm1109, %v1183, 0.0
      %1210 = vadd.xlane.f32.xlu0 %v1209
      %v1211 = vpop.xlane.xlu0 %1210
      %v1212 = vsel %vm1109, %v1184, 0.0
      %1213 = vadd.xlane.f32.xlu0 %v1212
      %v1214 = vpop.xlane.xlu0 %1213
      %v1215 = vsel %vm1109, %v1185, 0.0
      %1216 = vadd.xlane.f32.xlu0 %v1215
      %v1217 = vpop.xlane.xlu0 %1216
      %v1218 = vsel %vm1109, %v1186, 0.0
      %1219 = vadd.xlane.f32.xlu0 %v1218
      %v1220 = vpop.xlane.xlu0 %1219
      %v1221 = vsel %vm1109, %v1187, 0.0
      %1222 = vadd.xlane.f32.xlu0 %v1221
      %v1223 = vpop.xlane.xlu0 %1222
      %v1224 = vsel %vm1109, %v1188, 0.0
      %1225 = vadd.xlane.f32.xlu0 %v1224
      %v1226 = vpop.xlane.xlu0 %1225
      %v1227 = vsel %vm1109, %v1189, 0.0
      %1228 = vadd.xlane.f32.xlu0 %v1227
      %v1229 = vpop.xlane.xlu0 %1228
      %v1230 = vsel %vm1109, %v1190, 0.0
      %1231 = vadd.xlane.f32.xlu0 %v1230
      %v1232 = vpop.xlane.xlu0 %1231
      %v1233 = vsel %vm1109, %v1191, 0.0
      %1234 = vadd.xlane.f32.xlu0 %v1233
      %v1235 = vpop.xlane.xlu0 %1234
      %v1236 = vsel %vm1109, %v1192, 0.0
      %1237 = vadd.xlane.f32.xlu0 %v1236
      %v1238 = vpop.xlane.xlu0 %1237
      %v1239 = vsel %vm1109, %v1193, 0.0
      %1240 = vadd.xlane.f32.xlu0 %v1239
      %v1241 = vpop.xlane.xlu0 %1240
      %v1242 = vmul.f32 %v1196, 0.6
      %v1243 = vmul.f32 %v1199, 0.6
      %v1244 = vmul.f32 %v1202, 0.6
      %v1245 = vmul.f32 %v1205, 0.6
      %v1246 = vmul.f32 %v1208, 0.6
      %v1247 = vmul.f32 %v1211, 0.6
      %v1248 = vmul.f32 %v1214, 0.6
      %v1249 = vmul.f32 %v1217, 0.6
      %v1250 = vmul.f32 %v1220, 0.6
      %v1251 = vmul.f32 %v1223, 0.6
      %v1252 = vmul.f32 %v1226, 0.6
      %v1253 = vmul.f32 %v1229, 0.6
      %v1254 = vmul.f32 %v1232, 0.6
      %v1255 = vmul.f32 %v1235, 0.6
      %v1256 = vmul.f32 %v1238, 0.6
      %v1257 = vmul.f32 %v1241, 0.6
      %vm1258 = vcmask 7168
      %1259 = vst.msk [vmem:[%s408] sm:$0xff] %vm1258, %v1242
      %1260 = vst.msk [vmem:[%s408 + $0x8] sm:$0xff] %vm1258, %v1243
      %1261 = vst.msk [vmem:[%s408 + $0x10] sm:$0xff] %vm1258, %v1244
      %1262 = vst.msk [vmem:[%s408 + $0x18] sm:$0xff] %vm1258, %v1245
      %1263 = vst.msk [vmem:[%s408 + $0x20] sm:$0xff] %vm1258, %v1246
      %1264 = vst.msk [vmem:[%s408 + $0x28] sm:$0xff] %vm1258, %v1247
      %1265 = vst.msk [vmem:[%s408 + $0x30] sm:$0xff] %vm1258, %v1248
      %1266 = vst.msk [vmem:[%s408 + $0x38] sm:$0xff] %vm1258, %v1249
      %1267 = vst.msk [vmem:[%s408 + $0x40] sm:$0xff] %vm1258, %v1250
      %1268 = vst.msk [vmem:[%s408 + $0x48] sm:$0xff] %vm1258, %v1251
      %1269 = vst.msk [vmem:[%s408 + $0x50] sm:$0xff] %vm1258, %v1252
      %1270 = vst.msk [vmem:[%s408 + $0x58] sm:$0xff] %vm1258, %v1253
      %1271 = vst.msk [vmem:[%s408 + $0x60] sm:$0xff] %vm1258, %v1254
      %1272 = vst.msk [vmem:[%s408 + $0x68] sm:$0xff] %vm1258, %v1255
      %1273 = vst.msk [vmem:[%s408 + $0x70] sm:$0xff] %vm1258, %v1256
      %1274 = vst.msk [vmem:[%s408 + $0x78] sm:$0xff] %vm1258, %v1257
      %v1275 = vmul.f32 %v1093, %v1176
      %v1276 = vmul.f32 %v1094, %v1176
      %v1277 = vmul.f32 %v1095, %v1176
      %v1278 = vmul.f32 %v1096, %v1176
      %v1279 = vmul.f32 %v1097, %v1176
      %v1280 = vmul.f32 %v1098, %v1176
      %v1281 = vmul.f32 %v1099, %v1176
      %v1282 = vmul.f32 %v1100, %v1176
      %v1283 = vmul.f32 %v1101, %v1176
      %v1284 = vmul.f32 %v1102, %v1176
      %v1285 = vmul.f32 %v1103, %v1176
      %v1286 = vmul.f32 %v1104, %v1176
      %v1287 = vmul.f32 %v1105, %v1176
      %v1288 = vmul.f32 %v1106, %v1176
      %v1289 = vmul.f32 %v1107, %v1176
      %v1290 = vmul.f32 %v1108, %v1176
      %v1291 = vsel %vm1109, %v1275, 0.0
      %1292 = vadd.xlane.f32.xlu0 %v1291
      %v1293 = vpop.xlane.xlu0 %1292
      %v1294 = vsel %vm1109, %v1276, 0.0
      %1295 = vadd.xlane.f32.xlu0 %v1294
      %v1296 = vpop.xlane.xlu0 %1295
      %v1297 = vsel %vm1109, %v1277, 0.0
      %1298 = vadd.xlane.f32.xlu0 %v1297
      %v1299 = vpop.xlane.xlu0 %1298
      %v1300 = vsel %vm1109, %v1278, 0.0
      %1301 = vadd.xlane.f32.xlu0 %v1300
      %v1302 = vpop.xlane.xlu0 %1301
      %v1303 = vsel %vm1109, %v1279, 0.0
      %1304 = vadd.xlane.f32.xlu0 %v1303
      %v1305 = vpop.xlane.xlu0 %1304
      %v1306 = vsel %vm1109, %v1280, 0.0
      %1307 = vadd.xlane.f32.xlu0 %v1306
      %v1308 = vpop.xlane.xlu0 %1307
      %v1309 = vsel %vm1109, %v1281, 0.0
      %1310 = vadd.xlane.f32.xlu0 %v1309
      %v1311 = vpop.xlane.xlu0 %1310
      %v1312 = vsel %vm1109, %v1282, 0.0
      %1313 = vadd.xlane.f32.xlu0 %v1312
      %v1314 = vpop.xlane.xlu0 %1313
      %v1315 = vsel %vm1109, %v1283, 0.0
      %1316 = vadd.xlane.f32.xlu0 %v1315
      %v1317 = vpop.xlane.xlu0 %1316
      %v1318 = vsel %vm1109, %v1284, 0.0
      %1319 = vadd.xlane.f32.xlu0 %v1318
      %v1320 = vpop.xlane.xlu0 %1319
      %v1321 = vsel %vm1109, %v1285, 0.0
      %1322 = vadd.xlane.f32.xlu0 %v1321
      %v1323 = vpop.xlane.xlu0 %1322
      %v1324 = vsel %vm1109, %v1286, 0.0
      %1325 = vadd.xlane.f32.xlu0 %v1324
      %v1326 = vpop.xlane.xlu0 %1325
      %v1327 = vsel %vm1109, %v1287, 0.0
      %1328 = vadd.xlane.f32.xlu0 %v1327
      %v1329 = vpop.xlane.xlu0 %1328
      %v1330 = vsel %vm1109, %v1288, 0.0
      %1331 = vadd.xlane.f32.xlu0 %v1330
      %v1332 = vpop.xlane.xlu0 %1331
      %v1333 = vsel %vm1109, %v1289, 0.0
      %1334 = vadd.xlane.f32.xlu0 %v1333
      %v1335 = vpop.xlane.xlu0 %1334
      %v1336 = vsel %vm1109, %v1290, 0.0
      %1337 = vadd.xlane.f32.xlu0 %v1336
      %v1338 = vpop.xlane.xlu0 %1337
      %v1339 = vmul.f32 %v1293, 0.6
      %v1340 = vmul.f32 %v1296, 0.6
      %v1341 = vmul.f32 %v1299, 0.6
      %v1342 = vmul.f32 %v1302, 0.6
      %v1343 = vmul.f32 %v1305, 0.6
      %v1344 = vmul.f32 %v1308, 0.6
      %v1345 = vmul.f32 %v1311, 0.6
      %v1346 = vmul.f32 %v1314, 0.6
      %v1347 = vmul.f32 %v1317, 0.6
      %v1348 = vmul.f32 %v1320, 0.6
      %v1349 = vmul.f32 %v1323, 0.6
      %v1350 = vmul.f32 %v1326, 0.6
      %v1351 = vmul.f32 %v1329, 0.6
      %v1352 = vmul.f32 %v1332, 0.6
      %v1353 = vmul.f32 %v1335, 0.6
      %v1354 = vmul.f32 %v1338, 0.6
      %1355 = vst.msk [vmem:[%s414] sm:$0xff] %vm1258, %v1339
      %1356 = vst.msk [vmem:[%s414 + $0x8] sm:$0xff] %vm1258, %v1340
      %1357 = vst.msk [vmem:[%s414 + $0x10] sm:$0xff] %vm1258, %v1341
      %1358 = vst.msk [vmem:[%s414 + $0x18] sm:$0xff] %vm1258, %v1342
      %1359 = vst.msk [vmem:[%s414 + $0x20] sm:$0xff] %vm1258, %v1343
      %1360 = vst.msk [vmem:[%s414 + $0x28] sm:$0xff] %vm1258, %v1344
      %1361 = vst.msk [vmem:[%s414 + $0x30] sm:$0xff] %vm1258, %v1345
      %1362 = vst.msk [vmem:[%s414 + $0x38] sm:$0xff] %vm1258, %v1346
      %1363 = vst.msk [vmem:[%s414 + $0x40] sm:$0xff] %vm1258, %v1347
      %1364 = vst.msk [vmem:[%s414 + $0x48] sm:$0xff] %vm1258, %v1348
      %1365 = vst.msk [vmem:[%s414 + $0x50] sm:$0xff] %vm1258, %v1349
      %1366 = vst.msk [vmem:[%s414 + $0x58] sm:$0xff] %vm1258, %v1350
      %1367 = vst.msk [vmem:[%s414 + $0x60] sm:$0xff] %vm1258, %v1351
      %1368 = vst.msk [vmem:[%s414 + $0x68] sm:$0xff] %vm1258, %v1352
      %1369 = vst.msk [vmem:[%s414 + $0x70] sm:$0xff] %vm1258, %v1353
      %1370 = vst.msk [vmem:[%s414 + $0x78] sm:$0xff] %vm1258, %v1354
      %s1371 = smul.u32 16, %s22
      %p1372 = scmp.lt.s32.totalorder %s1371, 63
      %s1373 = scalar_select %p1372, %s1371, 63
      %s1374 = smul.addr %s1373, 8
      %s1375 = scalar_lea.vmem %s6, %s1374
      %s1376 = smul.u32 16, %s22
      %p1377 = scmp.lt.s32.totalorder %s1376, 63
      %s1378 = scalar_select %p1377, %s1376, 63
      %s1379 = smul.addr %s1378, 4
      %s1380 = scalar_lea.vmem %s7, %s1379
      %s1381 = smul.u32 16, %s22
      %p1382 = scmp.lt.s32.totalorder %s1381, 63
      %s1383 = scalar_select %p1382, %s1381, 63
      %s1384 = smul.addr %s1383, 8
      %s1385 = scalar_lea.vmem %s8, %s1384
      %s1386 = smul.u32 16, %s22
      %p1387 = scmp.lt.s32.totalorder %s1386, 63
      %s1388 = scalar_select %p1387, %s1386, 63
      %s1389 = smul.addr %s1388, 8
      %s1390 = scalar_lea.vmem %s9, %s1389
      %s1391 = smul.u32 16, %s22
      %p1392 = scmp.lt.s32.totalorder %s1391, 63
      %s1393 = scalar_select %p1392, %s1391, 63
      %s1394 = smul.addr %s1393, 8
      %s1395 = scalar_lea.vmem %s10, %s1394
      // Predicated region
      $region45: #{tpu_custom_call.1} parent=43 // pred_check
        %p1396 = pneg %p171
      $region46: #{tpu_custom_call.1} parent=43 // pred_check_branch
        %1398 = sbr.rel (%p1396) target = $region48
      $region47: #{tpu_custom_call.1} parent=43 // pred_region
        %s1399 = smul.u32 16, %s22
      $region48: #{tpu_custom_call.1} parent=43 // pred_fallthru
        _
      // Predicated region
      $region49: #{tpu_custom_call.1} parent=43 // pred_check
        %p1400 = pneg %p197
      $region50: #{tpu_custom_call.1} parent=43 // pred_check_branch
        %1402 = sbr.rel (%p1400) target = $region52
      $region51: #{tpu_custom_call.1} parent=43 // pred_region
        %s1403 = smul.u32 16, %s22
      $region52: #{tpu_custom_call.1} parent=43 // pred_fallthru
        _
      // Predicated region
      $region53: #{tpu_custom_call.1} parent=43 // pred_check
        %p1404 = pneg %p223
      $region54: #{tpu_custom_call.1} parent=43 // pred_check_branch
        %1406 = sbr.rel (%p1404) target = $region56
      $region55: #{tpu_custom_call.1} parent=43 // pred_region
        %s1407 = smul.u32 16, %s22
      $region56: #{tpu_custom_call.1} parent=43 // pred_fallthru
        _
      // Predicated region
      $region57: #{tpu_custom_call.1} parent=43 // pred_check
        %p1408 = pneg %p249
      $region58: #{tpu_custom_call.1} parent=43 // pred_check_branch
        %1410 = sbr.rel (%p1408) target = $region60
      $region59: #{tpu_custom_call.1} parent=43 // pred_region
        %s1411 = smul.u32 16, %s22
      $region60: #{tpu_custom_call.1} parent=43 // pred_fallthru
        _
      // Predicated region
      $region61: #{tpu_custom_call.1} parent=43 // pred_check
        %p1412 = pneg %p275
      $region62: #{tpu_custom_call.1} parent=43 // pred_check_branch
        %1414 = sbr.rel (%p1412) target = $region64
      $region63: #{tpu_custom_call.1} parent=43 // pred_region
        %s1415 = smul.u32 16, %s22
      $region64: #{tpu_custom_call.1} parent=43 // pred_fallthru
        _
    $region44: #{tpu_custom_call.1} parent=5 // pred_fallthru
      _
    %p1416 = scmp.le.s32.totalorder 2, %s17
    // Predicated region
    $region65: #{tpu_custom_call.1} parent=5 // pred_check
      %p1417 = pneg %p1416
    $region66: #{tpu_custom_call.1} parent=5 // pred_check_branch
      %1419 = sbr.rel (%p1417) target = $region68
    $region67: #{tpu_custom_call.1} parent=5 // pred_region
      %s1420 = ssub.s32 %s17, 2
      // Predicated region
      $region69: #{tpu_custom_call.1} parent=67 // pred_check
        %p1421 = pneg %p177
      $region70: #{tpu_custom_call.1} parent=67 // pred_check_branch
        %1423 = sbr.rel (%p1421) target = $region72
      $region71: #{tpu_custom_call.1} parent=67 // pred_region
        %s1424 = smul.u32 16, %s23
        %p1425 = scmp.lt.s32.totalorder %s1424, 63
        %s1426 = scalar_select %p1425, %s1424, 63
        %s1427 = smul.addr %s1426, 8
        %s1428 = scalar_lea.vmem %s6, %s1427
      $region72: #{tpu_custom_call.1} parent=67 // pred_fallthru
        _
      // Predicated region
      $region73: #{tpu_custom_call.1} parent=67 // pred_check
        %p1429 = pneg %p203
      $region74: #{tpu_custom_call.1} parent=67 // pred_check_branch
        %1431 = sbr.rel (%p1429) target = $region76
      $region75: #{tpu_custom_call.1} parent=67 // pred_region
        %s1432 = smul.u32 16, %s23
        %p1433 = scmp.lt.s32.totalorder %s1432, 63
        %s1434 = scalar_select %p1433, %s1432, 63
        %s1435 = smul.addr %s1434, 4
        %s1436 = scalar_lea.vmem %s7, %s1435
      $region76: #{tpu_custom_call.1} parent=67 // pred_fallthru
        _
      // Predicated region
      $region77: #{tpu_custom_call.1} parent=67 // pred_check
        %p1437 = pneg %p229
      $region78: #{tpu_custom_call.1} parent=67 // pred_check_branch
        %1439 = sbr.rel (%p1437) target = $region80
      $region79: #{tpu_custom_call.1} parent=67 // pred_region
        %s1440 = smul.u32 16, %s23
        %p1441 = scmp.lt.s32.totalorder %s1440, 63
        %s1442 = scalar_select %p1441, %s1440, 63
        %s1443 = smul.addr %s1442, 8
        %s1444 = scalar_lea.vmem %s8, %s1443
      $region80: #{tpu_custom_call.1} parent=67 // pred_fallthru
        _
      // Predicated region
      $region81: #{tpu_custom_call.1} parent=67 // pred_check
        %p1445 = pneg %p255
      $region82: #{tpu_custom_call.1} parent=67 // pred_check_branch
        %1447 = sbr.rel (%p1445) target = $region84
      $region83: #{tpu_custom_call.1} parent=67 // pred_region
        %s1448 = smul.u32 16, %s23
        %p1449 = scmp.lt.s32.totalorder %s1448, 63
        %s1450 = scalar_select %p1449, %s1448, 63
        %s1451 = smul.addr %s1450, 8
        %s1452 = scalar_lea.vmem %s9, %s1451
      $region84: #{tpu_custom_call.1} parent=67 // pred_fallthru
        _
      // Predicated region
      $region85: #{tpu_custom_call.1} parent=67 // pred_check
        %p1453 = pneg %p281
      $region86: #{tpu_custom_call.1} parent=67 // pred_check_branch
        %1455 = sbr.rel (%p1453) target = $region88
      $region87: #{tpu_custom_call.1} parent=67 // pred_region
        %s1456 = smul.u32 16, %s23
        %p1457 = scmp.lt.s32.totalorder %s1456, 63
        %s1458 = scalar_select %p1457, %s1456, 63
        %s1459 = smul.addr %s1458, 8
        %s1460 = scalar_lea.vmem %s10, %s1459
      $region88: #{tpu_custom_call.1} parent=67 // pred_fallthru
        _
    $region68: #{tpu_custom_call.1} parent=5 // pred_fallthru
      _
  $region6: #{tpu_custom_call.1} parent=0 // loop_footer
    %s21 = sadd.s32 1, %s17
  $region7: #{tpu_custom_call.1} parent=0 // loop_footer_branch
    %16 = sbr.rel target = $region3
  $region8: #{tpu_custom_call.1} parent=0 // loop_exit
    _

</llo_original>
